<compile_context>
chip_gen: v7x
topology: tpu7x:2x2x1
jax: 0.10.0
libtpu: 0.0.40
codegen_flags: <defaults>
</compile_context>

<pallas_src>
import jax
import jax.numpy as jnp
from jax import lax
from jax.experimental import pallas as pl
from jax.experimental.pallas import tpu as pltpu


def _make_fused_block_kernel(H, W, Cin, C):
    """relu(bn2(conv2(relu(bn1(conv1(x))))) + x), one image per grid step."""

    def pack_rows(dst_ref, src):
        # dst_ref: (H+2, W, 3*c) scratch (mxu dtype) of zero-padded, dx-packed rows:
        #   dst[y+1, x, dx*c:(dx+1)*c] == padded_src[y+1, x+dx, :]
        # src: (H, W, c) f32 value.  W-edge pads are baked into the packed value,
        # so only the two halo rows need per-step zeroing and the data region is
        # written with a single aligned store.
        c = src.shape[-1]
        zcol = jnp.zeros((H, 1, c), src.dtype)
        left = jnp.concatenate([zcol, src[:, :W - 1, :]], axis=1)    # x-1 tap (dx=0)
        right = jnp.concatenate([src[:, 1:, :], zcol], axis=1)       # x+1 tap (dx=2)
        packed = jnp.concatenate([left, src, right], axis=-1)        # (H, W, 3c)
        zrow = jnp.zeros((1, W, 3 * c), dst_ref.dtype)
        dst_ref[0:1] = zrow                                          # top halo row
        dst_ref[H + 1:H + 2] = zrow                                  # bottom halo row
        dst_ref[1:H + 1, :, :] = packed.astype(dst_ref.dtype)        # one aligned store

    def conv3x3(src_ref, w_ref):
        # src_ref: (H+2, W, 3c) packed rows (mxu dtype); w_ref: (3, 3c, C).
        # 3x3 conv (stride 1, pad 1) == sum over dy of (H*W, 3c) @ (3c, C),
        # accumulated as values (no VMEM accumulator round-trips; f32 accum).
        k = src_ref.shape[-1]
        out = None
        for dy in range(3):                                          # unrolled
            win = src_ref[dy:dy + H, :, :].reshape(H * W, k)
            part = jnp.dot(win, w_ref[dy], preferred_element_type=jnp.float32)
            out = part if out is None else out + part
        return out                                                   # (H*W, C) f32

    def kernel(x_ref, w1_ref, s1_ref, b1_ref, w2_ref, s2_ref, b2_ref, o_ref,
               xpk_ref, mpk_ref):
        x = x_ref[0].astype(jnp.float32)                             # (H, W, Cin)

        # conv1 + bn1 + relu  (epilogue applied directly to the value accumulator)
        pack_rows(xpk_ref, x)
        h1 = jnp.maximum(conv3x3(xpk_ref, w1_ref) * s1_ref[...] + b1_ref[...], 0.0)

        # conv2 + bn2 + residual + relu (conv1 output never leaves VMEM)
        pack_rows(mpk_ref, h1.reshape(H, W, C))
        out = conv3x3(mpk_ref, w2_ref) * s2_ref[...] + b2_ref[...]
        out = jnp.maximum(out + x.reshape(H * W, Cin), 0.0)
        o_ref[...] = out.reshape(1, H, W, C).astype(o_ref.dtype)

    return kernel


def fold_bn(gamma, beta, mean, var, eps=1e-5):
    scale = gamma / jnp.sqrt(var + eps)
    return scale, beta - mean * scale


def basic_block_pallas(x_nhwc, params, mxu_dtype=jnp.bfloat16):
    """Forward of BasicBlock (stride=1, downsample=None) as a single fused pallas_call.

    mxu_dtype=jnp.float32 gives a full-precision validation path (f32 scratch/weights).
    """
    N, H, W, Cin = x_nhwc.shape
    C = params["w1"].shape[-1]
    assert params["w1"].shape == (3, 3, Cin, C)
    assert Cin == C, "identity residual requires Cin == Cout"
    sub = 16 if mxu_dtype == jnp.bfloat16 else 8     # sublane tile of packed scratch
    assert W % sub == 0, f"W must be a multiple of {sub} to keep reshapes copy-free"

    s1, b1 = fold_bn(params["bn1_gamma"], params["bn1_beta"],
                     params["bn1_mean"], params["bn1_var"])
    s2, b2 = fold_bn(params["bn2_gamma"], params["bn2_beta"],
                     params["bn2_mean"], params["bn2_var"])

    # HWIO (3,3,Cin,C) -> (3, 3*Cin, C): K index dx*Cin + cin matches the lane
    # order of the dx-packed activation windows built inside the kernel.
    w1p = params["w1"].reshape(3, 3 * Cin, C).astype(mxu_dtype)
    w2p = params["w2"].reshape(3, 3 * C, C).astype(mxu_dtype)

    # Explicit scoped-VMEM budget: double-buffered in/out blocks + weights + scratch.
    isz = x_nhwc.dtype.itemsize
    msz = jnp.dtype(mxu_dtype).itemsize
    est = (2 * (H * W * Cin + H * W * C) * isz          # x / out blocks (x2 buffers)
           + 2 * (9 * Cin * C + 9 * C * C) * msz        # packed weights (x2 buffers)
           + 4 * C * 4 * 2                              # folded BN scale/bias
           + (H + 2) * W * 3 * (Cin + C) * msz)         # packed scratches
    vmem_limit = int(min(max(2 * est, 24 * 1024 * 1024), 64 * 1024 * 1024))

    kernel = _make_fused_block_kernel(H, W, Cin, C)
    return pl.pallas_call(
        kernel,
        out_shape=jax.ShapeDtypeStruct((N, H, W, C), x_nhwc.dtype),
        grid=(N,),
        in_specs=[
            pl.BlockSpec((1, H, W, Cin), lambda n: (n, 0, 0, 0)),   # x (also residual)
            pl.BlockSpec((3, 3 * Cin, C), lambda n: (0, 0, 0)),     # w1 packed
            pl.BlockSpec((1, C), lambda n: (0, 0)),                 # bn1 scale
            pl.BlockSpec((1, C), lambda n: (0, 0)),                 # bn1 bias
            pl.BlockSpec((3, 3 * C, C), lambda n: (0, 0, 0)),       # w2 packed
            pl.BlockSpec((1, C), lambda n: (0, 0)),                 # bn2 scale
            pl.BlockSpec((1, C), lambda n: (0, 0)),                 # bn2 bias
        ],
        out_specs=pl.BlockSpec((1, H, W, C), lambda n: (n, 0, 0, 0)),
        scratch_shapes=[
            pltpu.VMEM((H + 2, W, 3 * Cin), mxu_dtype),   # packed conv1 input rows
            pltpu.VMEM((H + 2, W, 3 * C), mxu_dtype),     # packed conv1 output rows
        ],
        compiler_params=pltpu.CompilerParams(
            dimension_semantics=("parallel",),            # images -> v7x 2-TC split
            vmem_limit_bytes=vmem_limit),
    )(x_nhwc, w1p, s1.reshape(1, C), b1.reshape(1, C),
      w2p, s2.reshape(1, C), b2.reshape(1, C))


def basic_block_reference(x_nhwc, params):
    """Pure-JAX reference (lax conv, f32) for correctness checking."""
    s1, b1 = fold_bn(params["bn1_gamma"], params["bn1_beta"],
                     params["bn1_mean"], params["bn1_var"])
    s2, b2 = fold_bn(params["bn2_gamma"], params["bn2_beta"],
                     params["bn2_mean"], params["bn2_var"])
    dn = lax.conv_dimension_numbers(x_nhwc.shape, params["w1"].shape,
                                    ("NHWC", "HWIO", "NHWC"))
    out = lax.conv_general_dilated(x_nhwc, params["w1"], (1, 1), "SAME",
                                   dimension_numbers=dn)
    out = jnp.maximum(out * s1 + b1, 0.0)
    out = lax.conv_general_dilated(out, params["w2"], (1, 1), "SAME",
                                   dimension_numbers=dn)
    return jnp.maximum(out * s2 + b2 + x_nhwc, 0.0)


def init_params(key, inplanes, planes):
    ks = jax.random.split(key, 8)
    w1 = jax.random.normal(ks[0], (3, 3, inplanes, planes), jnp.float32) / jnp.sqrt(inplanes * 9)
    w2 = jax.random.normal(ks[1], (3, 3, planes, planes), jnp.float32) / jnp.sqrt(planes * 9)
    return {
        "w1": w1,
        "w2": w2,
        "bn1_gamma": 1.0 + 0.1 * jax.random.normal(ks[2], (planes,), jnp.float32),
        "bn1_beta": 0.1 * jax.random.normal(ks[3], (planes,), jnp.float32),
        "bn1_mean": 0.1 * jax.random.normal(ks[4], (planes,), jnp.float32),
        "bn1_var": 1.0 + 0.1 * jnp.abs(jax.random.normal(ks[5], (planes,), jnp.float32)),
        "bn2_gamma": 1.0 + 0.1 * jax.random.normal(ks[6], (planes,), jnp.float32),
        "bn2_beta": 0.1 * jax.random.normal(ks[7], (planes,), jnp.float32),
        "bn2_mean": jnp.zeros((planes,), jnp.float32),
        "bn2_var": jnp.ones((planes,), jnp.float32),
    }


if __name__ == "__main__":
    key = jax.random.PRNGKey(0)
    kx, kp = jax.random.split(key)

    N, C, H, W = 2, 4, 16, 16          # inplanes = planes = 4, stride = 1
    x_nchw = jax.random.normal(kx, (N, C, H, W), jnp.float32)   # PyTorch layout
    x_nhwc = jnp.transpose(x_nchw, (0, 2, 3, 1))                # kernel layout

    params = init_params(kp, C, C)

    out = jax.block_until_ready(basic_block_pallas(x_nhwc, params))
    ref = basic_block_reference(x_nhwc, params)

    assert out.shape == (N, H, W, C)
    # bf16 MXU inputs -> loosened tolerance vs the f32 lax.conv reference.
    assert jnp.allclose(out, ref, atol=5e-2, rtol=5e-2), "mismatch vs reference"

    # NCHW result if needed: jnp.transpose(out, (0, 3, 1, 2))
    print("KERNEL_OK")
</pallas_src>

<mosaic_0001>
module attributes {stable_mosaic.version = 11 : i64} {
  func.func @kernel(%arg0: i32, %arg1: memref<1x16x16x4xf32, #tpu.memory_space<vmem>>, %arg2: memref<3x12x4xbf16, #tpu.memory_space<vmem>>, %arg3: memref<1x4xf32, #tpu.memory_space<vmem>>, %arg4: memref<1x4xf32, #tpu.memory_space<vmem>>, %arg5: memref<3x12x4xbf16, #tpu.memory_space<vmem>>, %arg6: memref<1x4xf32, #tpu.memory_space<vmem>>, %arg7: memref<1x4xf32, #tpu.memory_space<vmem>>, %arg8: memref<1x16x16x4xf32, #tpu.memory_space<vmem>>, %arg9: memref<18x16x12xbf16, #tpu.memory_space<vmem>>, %arg10: memref<18x16x12xbf16, #tpu.memory_space<vmem>>) attributes {dimension_semantics = [#tpu.dimension_semantics<parallel>], iteration_bounds = array<i64: 2>, scalar_prefetch = 0 : i64, scratch_operands = 2 : i64, tpu.core_type = #tpu.core_type<tc>, window_params = [{transform_indices = @transform_0, window_bounds = array<i64: 1, 16, 16, 4>}, {pipeline_mode = #tpu.pipeline_mode<synchronous>, transform_indices = @transform_1, window_bounds = array<i64: 3, 12, 4>}, {pipeline_mode = #tpu.pipeline_mode<synchronous>, transform_indices = @transform_2, window_bounds = array<i64: 1, 4>}, {pipeline_mode = #tpu.pipeline_mode<synchronous>, transform_indices = @transform_3, window_bounds = array<i64: 1, 4>}, {pipeline_mode = #tpu.pipeline_mode<synchronous>, transform_indices = @transform_4, window_bounds = array<i64: 3, 12, 4>}, {pipeline_mode = #tpu.pipeline_mode<synchronous>, transform_indices = @transform_5, window_bounds = array<i64: 1, 4>}, {pipeline_mode = #tpu.pipeline_mode<synchronous>, transform_indices = @transform_6, window_bounds = array<i64: 1, 4>}, {transform_indices = @transform_7, window_bounds = array<i64: 1, 16, 16, 4>}]} {
    %c0 = arith.constant 0 : index
    %c0_0 = arith.constant 0 : index
    %c0_1 = arith.constant 0 : index
    %c0_2 = arith.constant 0 : index
    %0 = vector.load %arg1[%c0, %c0_0, %c0_1, %c0_2] : memref<1x16x16x4xf32, #tpu.memory_space<vmem>>, vector<1x16x16x4xf32>
    %1 = vector.shape_cast %0 : vector<1x16x16x4xf32> to vector<16x16x4xf32>
    %cst = arith.constant 0.000000e+00 : f32
    %2 = vector.broadcast %cst : f32 to vector<16x1x4xf32>
    %3 = vector.extract_strided_slice %1 {offsets = [0, 0, 0], sizes = [16, 15, 4], strides = [1, 1, 1]} : vector<16x16x4xf32> to vector<16x15x4xf32>
    %4 = tpu.concatenate %2, %3 in 1 : vector<16x1x4xf32>, vector<16x15x4xf32> -> vector<16x16x4xf32>
    %5 = vector.extract_strided_slice %1 {offsets = [0, 1, 0], sizes = [16, 15, 4], strides = [1, 1, 1]} : vector<16x16x4xf32> to vector<16x15x4xf32>
    %6 = tpu.concatenate %5, %2 in 1 : vector<16x15x4xf32>, vector<16x1x4xf32> -> vector<16x16x4xf32>
    %7 = tpu.concatenate %4, %1, %6 in 2 : vector<16x16x4xf32>, vector<16x16x4xf32>, vector<16x16x4xf32> -> vector<16x16x12xf32>
    %cst_3 = arith.constant 0.000000e+00 : bf16
    %8 = vector.broadcast %cst_3 : bf16 to vector<1x16x12xbf16>
    %c0_4 = arith.constant 0 : index
    %c0_5 = arith.constant 0 : index
    %c0_6 = arith.constant 0 : index
    %9 = vector.load %arg9[%c0_4, %c0_5, %c0_6] : memref<18x16x12xbf16, #tpu.memory_space<vmem>>, vector<1x16x12xbf16>
    tpu.vector_store %arg9[%c0_4, %c0_5, %c0_6], %8 {strides = array<i32>} : memref<18x16x12xbf16, #tpu.memory_space<vmem>>, vector<1x16x12xbf16>,
    %c17 = arith.constant 17 : index
    %c0_7 = arith.constant 0 : index
    %c0_8 = arith.constant 0 : index
    %10 = vector.load %arg9[%c17, %c0_7, %c0_8] : memref<18x16x12xbf16, #tpu.memory_space<vmem>>, vector<1x16x12xbf16>
    tpu.vector_store %arg9[%c17, %c0_7, %c0_8], %8 {strides = array<i32>} : memref<18x16x12xbf16, #tpu.memory_space<vmem>>, vector<1x16x12xbf16>,
    %11 = arith.truncf %7 : vector<16x16x12xf32> to vector<16x16x12xbf16>
    %c1 = arith.constant 1 : index
    %c0_9 = arith.constant 0 : index
    %c0_10 = arith.constant 0 : index
    %12 = vector.load %arg9[%c1, %c0_9, %c0_10] : memref<18x16x12xbf16, #tpu.memory_space<vmem>>, vector<16x16x12xbf16>
    tpu.vector_store %arg9[%c1, %c0_9, %c0_10], %11 {strides = array<i32>} : memref<18x16x12xbf16, #tpu.memory_space<vmem>>, vector<16x16x12xbf16>,
    %c0_11 = arith.constant 0 : index
    %c0_12 = arith.constant 0 : index
    %c0_13 = arith.constant 0 : index
    %13 = vector.load %arg9[%c0_11, %c0_12, %c0_13] : memref<18x16x12xbf16, #tpu.memory_space<vmem>>, vector<16x16x12xbf16>
    %14 = vector.shape_cast %13 : vector<16x16x12xbf16> to vector<256x12xbf16>
    %c0_14 = arith.constant 0 : index
    %c0_15 = arith.constant 0 : index
    %c0_16 = arith.constant 0 : index
    %15 = vector.load %arg2[%c0_14, %c0_15, %c0_16] : memref<3x12x4xbf16, #tpu.memory_space<vmem>>, vector<1x12x4xbf16>
    %16 = vector.shape_cast %15 : vector<1x12x4xbf16> to vector<12x4xbf16>
    %cst_17 = arith.constant dense<0.000000e+00> : vector<256x4xf32>
    %17 = tpu.matmul %14, %16, %cst_17 {dimension_numbers = #tpu.dot_dimension_numbers<[1], [0], [0], [1], [0, 0, 1, 1], [], []>} : vector<256x12xbf16>, vector<12x4xbf16>, vector<256x4xf32> -> vector<256x4xf32>
    %c1_18 = arith.constant 1 : index
    %c0_19 = arith.constant 0 : index
    %c0_20 = arith.constant 0 : index
    %18 = vector.load %arg9[%c1_18, %c0_19, %c0_20] : memref<18x16x12xbf16, #tpu.memory_space<vmem>>, vector<16x16x12xbf16>
    %19 = vector.shape_cast %18 : vector<16x16x12xbf16> to vector<256x12xbf16>
    %c1_21 = arith.constant 1 : index
    %c0_22 = arith.constant 0 : index
    %c0_23 = arith.constant 0 : index
    %20 = vector.load %arg2[%c1_21, %c0_22, %c0_23] : memref<3x12x4xbf16, #tpu.memory_space<vmem>>, vector<1x12x4xbf16>
    %21 = vector.shape_cast %20 : vector<1x12x4xbf16> to vector<12x4xbf16>
    %cst_24 = arith.constant dense<0.000000e+00> : vector<256x4xf32>
    %22 = tpu.matmul %19, %21, %cst_24 {dimension_numbers = #tpu.dot_dimension_numbers<[1], [0], [0], [1], [0, 0, 1, 1], [], []>} : vector<256x12xbf16>, vector<12x4xbf16>, vector<256x4xf32> -> vector<256x4xf32>
    %23 = arith.addf %17, %22 : vector<256x4xf32>
    %c2 = arith.constant 2 : index
    %c0_25 = arith.constant 0 : index
    %c0_26 = arith.constant 0 : index
    %24 = vector.load %arg9[%c2, %c0_25, %c0_26] : memref<18x16x12xbf16, #tpu.memory_space<vmem>>, vector<16x16x12xbf16>
    %25 = vector.shape_cast %24 : vector<16x16x12xbf16> to vector<256x12xbf16>
    %c2_27 = arith.constant 2 : index
    %c0_28 = arith.constant 0 : index
    %c0_29 = arith.constant 0 : index
    %26 = vector.load %arg2[%c2_27, %c0_28, %c0_29] : memref<3x12x4xbf16, #tpu.memory_space<vmem>>, vector<1x12x4xbf16>
    %27 = vector.shape_cast %26 : vector<1x12x4xbf16> to vector<12x4xbf16>
    %cst_30 = arith.constant dense<0.000000e+00> : vector<256x4xf32>
    %28 = tpu.matmul %25, %27, %cst_30 {dimension_numbers = #tpu.dot_dimension_numbers<[1], [0], [0], [1], [0, 0, 1, 1], [], []>} : vector<256x12xbf16>, vector<12x4xbf16>, vector<256x4xf32> -> vector<256x4xf32>
    %29 = arith.addf %23, %28 : vector<256x4xf32>
    %c0_31 = arith.constant 0 : index
    %c0_32 = arith.constant 0 : index
    %30 = vector.load %arg3[%c0_31, %c0_32] : memref<1x4xf32, #tpu.memory_space<vmem>>, vector<1x4xf32>
    %31 = vector.broadcast %30 : vector<1x4xf32> to vector<256x4xf32>
    %32 = arith.mulf %29, %31 : vector<256x4xf32>
    %c0_33 = arith.constant 0 : index
    %c0_34 = arith.constant 0 : index
    %33 = vector.load %arg4[%c0_33, %c0_34] : memref<1x4xf32, #tpu.memory_space<vmem>>, vector<1x4xf32>
    %34 = vector.broadcast %33 : vector<1x4xf32> to vector<256x4xf32>
    %35 = arith.addf %32, %34 : vector<256x4xf32>
    %cst_35 = arith.constant 0.000000e+00 : f32
    %36 = vector.broadcast %cst_35 : f32 to vector<256x4xf32>
    %37 = arith.maximumf %35, %36 : vector<256x4xf32>
    %38 = vector.shape_cast %37 : vector<256x4xf32> to vector<16x16x4xf32>
    %cst_36 = arith.constant 0.000000e+00 : f32
    %39 = vector.broadcast %cst_36 : f32 to vector<16x1x4xf32>
    %40 = vector.extract_strided_slice %38 {offsets = [0, 0, 0], sizes = [16, 15, 4], strides = [1, 1, 1]} : vector<16x16x4xf32> to vector<16x15x4xf32>
    %41 = tpu.concatenate %39, %40 in 1 : vector<16x1x4xf32>, vector<16x15x4xf32> -> vector<16x16x4xf32>
    %42 = vector.extract_strided_slice %38 {offsets = [0, 1, 0], sizes = [16, 15, 4], strides = [1, 1, 1]} : vector<16x16x4xf32> to vector<16x15x4xf32>
    %43 = tpu.concatenate %42, %39 in 1 : vector<16x15x4xf32>, vector<16x1x4xf32> -> vector<16x16x4xf32>
    %44 = tpu.concatenate %41, %38, %43 in 2 : vector<16x16x4xf32>, vector<16x16x4xf32>, vector<16x16x4xf32> -> vector<16x16x12xf32>
    %cst_37 = arith.constant 0.000000e+00 : bf16
    %45 = vector.broadcast %cst_37 : bf16 to vector<1x16x12xbf16>
    %c0_38 = arith.constant 0 : index
    %c0_39 = arith.constant 0 : index
    %c0_40 = arith.constant 0 : index
    %46 = vector.load %arg10[%c0_38, %c0_39, %c0_40] : memref<18x16x12xbf16, #tpu.memory_space<vmem>>, vector<1x16x12xbf16>
    tpu.vector_store %arg10[%c0_38, %c0_39, %c0_40], %45 {strides = array<i32>} : memref<18x16x12xbf16, #tpu.memory_space<vmem>>, vector<1x16x12xbf16>,
    %c17_41 = arith.constant 17 : index
    %c0_42 = arith.constant 0 : index
    %c0_43 = arith.constant 0 : index
    %47 = vector.load %arg10[%c17_41, %c0_42, %c0_43] : memref<18x16x12xbf16, #tpu.memory_space<vmem>>, vector<1x16x12xbf16>
    tpu.vector_store %arg10[%c17_41, %c0_42, %c0_43], %45 {strides = array<i32>} : memref<18x16x12xbf16, #tpu.memory_space<vmem>>, vector<1x16x12xbf16>,
    %48 = arith.truncf %44 : vector<16x16x12xf32> to vector<16x16x12xbf16>
    %c1_44 = arith.constant 1 : index
    %c0_45 = arith.constant 0 : index
    %c0_46 = arith.constant 0 : index
    %49 = vector.load %arg10[%c1_44, %c0_45, %c0_46] : memref<18x16x12xbf16, #tpu.memory_space<vmem>>, vector<16x16x12xbf16>
    tpu.vector_store %arg10[%c1_44, %c0_45, %c0_46], %48 {strides = array<i32>} : memref<18x16x12xbf16, #tpu.memory_space<vmem>>, vector<16x16x12xbf16>,
    %c0_47 = arith.constant 0 : index
    %c0_48 = arith.constant 0 : index
    %c0_49 = arith.constant 0 : index
    %50 = vector.load %arg10[%c0_47, %c0_48, %c0_49] : memref<18x16x12xbf16, #tpu.memory_space<vmem>>, vector<16x16x12xbf16>
    %51 = vector.shape_cast %50 : vector<16x16x12xbf16> to vector<256x12xbf16>
    %c0_50 = arith.constant 0 : index
    %c0_51 = arith.constant 0 : index
    %c0_52 = arith.constant 0 : index
    %52 = vector.load %arg5[%c0_50, %c0_51, %c0_52] : memref<3x12x4xbf16, #tpu.memory_space<vmem>>, vector<1x12x4xbf16>
    %53 = vector.shape_cast %52 : vector<1x12x4xbf16> to vector<12x4xbf16>
    %cst_53 = arith.constant dense<0.000000e+00> : vector<256x4xf32>
    %54 = tpu.matmul %51, %53, %cst_53 {dimension_numbers = #tpu.dot_dimension_numbers<[1], [0], [0], [1], [0, 0, 1, 1], [], []>} : vector<256x12xbf16>, vector<12x4xbf16>, vector<256x4xf32> -> vector<256x4xf32>
    %c1_54 = arith.constant 1 : index
    %c0_55 = arith.constant 0 : index
    %c0_56 = arith.constant 0 : index
    %55 = vector.load %arg10[%c1_54, %c0_55, %c0_56] : memref<18x16x12xbf16, #tpu.memory_space<vmem>>, vector<16x16x12xbf16>
    %56 = vector.shape_cast %55 : vector<16x16x12xbf16> to vector<256x12xbf16>
    %c1_57 = arith.constant 1 : index
    %c0_58 = arith.constant 0 : index
    %c0_59 = arith.constant 0 : index
    %57 = vector.load %arg5[%c1_57, %c0_58, %c0_59] : memref<3x12x4xbf16, #tpu.memory_space<vmem>>, vector<1x12x4xbf16>
    %58 = vector.shape_cast %57 : vector<1x12x4xbf16> to vector<12x4xbf16>
    %cst_60 = arith.constant dense<0.000000e+00> : vector<256x4xf32>
    %59 = tpu.matmul %56, %58, %cst_60 {dimension_numbers = #tpu.dot_dimension_numbers<[1], [0], [0], [1], [0, 0, 1, 1], [], []>} : vector<256x12xbf16>, vector<12x4xbf16>, vector<256x4xf32> -> vector<256x4xf32>
    %60 = arith.addf %54, %59 : vector<256x4xf32>
    %c2_61 = arith.constant 2 : index
    %c0_62 = arith.constant 0 : index
    %c0_63 = arith.constant 0 : index
    %61 = vector.load %arg10[%c2_61, %c0_62, %c0_63] : memref<18x16x12xbf16, #tpu.memory_space<vmem>>, vector<16x16x12xbf16>
    %62 = vector.shape_cast %61 : vector<16x16x12xbf16> to vector<256x12xbf16>
    %c2_64 = arith.constant 2 : index
    %c0_65 = arith.constant 0 : index
    %c0_66 = arith.constant 0 : index
    %63 = vector.load %arg5[%c2_64, %c0_65, %c0_66] : memref<3x12x4xbf16, #tpu.memory_space<vmem>>, vector<1x12x4xbf16>
    %64 = vector.shape_cast %63 : vector<1x12x4xbf16> to vector<12x4xbf16>
    %cst_67 = arith.constant dense<0.000000e+00> : vector<256x4xf32>
    %65 = tpu.matmul %62, %64, %cst_67 {dimension_numbers = #tpu.dot_dimension_numbers<[1], [0], [0], [1], [0, 0, 1, 1], [], []>} : vector<256x12xbf16>, vector<12x4xbf16>, vector<256x4xf32> -> vector<256x4xf32>
    %66 = arith.addf %60, %65 : vector<256x4xf32>
    %c0_68 = arith.constant 0 : index
    %c0_69 = arith.constant 0 : index
    %67 = vector.load %arg6[%c0_68, %c0_69] : memref<1x4xf32, #tpu.memory_space<vmem>>, vector<1x4xf32>
    %68 = vector.broadcast %67 : vector<1x4xf32> to vector<256x4xf32>
    %69 = arith.mulf %66, %68 : vector<256x4xf32>
    %c0_70 = arith.constant 0 : index
    %c0_71 = arith.constant 0 : index
    %70 = vector.load %arg7[%c0_70, %c0_71] : memref<1x4xf32, #tpu.memory_space<vmem>>, vector<1x4xf32>
    %71 = vector.broadcast %70 : vector<1x4xf32> to vector<256x4xf32>
    %72 = arith.addf %69, %71 : vector<256x4xf32>
    %73 = vector.shape_cast %1 : vector<16x16x4xf32> to vector<256x4xf32>
    %74 = arith.addf %72, %73 : vector<256x4xf32>
    %cst_72 = arith.constant 0.000000e+00 : f32
    %75 = vector.broadcast %cst_72 : f32 to vector<256x4xf32>
    %76 = arith.maximumf %74, %75 : vector<256x4xf32>
    %77 = vector.shape_cast %76 : vector<256x4xf32> to vector<1x16x16x4xf32>
    %c0_73 = arith.constant 0 : index
    %c0_74 = arith.constant 0 : index
    %c0_75 = arith.constant 0 : index
    %c0_76 = arith.constant 0 : index
    %78 = vector.load %arg8[%c0_73, %c0_74, %c0_75, %c0_76] : memref<1x16x16x4xf32, #tpu.memory_space<vmem>>, vector<1x16x16x4xf32>
    tpu.vector_store %arg8[%c0_73, %c0_74, %c0_75, %c0_76], %77 {strides = array<i32>} : memref<1x16x16x4xf32, #tpu.memory_space<vmem>>, vector<1x16x16x4xf32>,
    return
  }
  func.func @transform_0(%arg0: i32) -> (i32, i32, i32, i32) {
    %c0_i32 = arith.constant 0 : i32
    %c0_i32_0 = arith.constant 0 : i32
    %c0_i32_1 = arith.constant 0 : i32
    %c0_i32_2 = arith.constant 0 : i32
    return %arg0, %c0_i32, %c0_i32_0, %c0_i32_1 : i32, i32, i32, i32
  }
  func.func @transform_1(%arg0: i32) -> (i32, i32, i32) {
    %c0_i32 = arith.constant 0 : i32
    %c0_i32_0 = arith.constant 0 : i32
    %c0_i32_1 = arith.constant 0 : i32
    %c0_i32_2 = arith.constant 0 : i32
    return %c0_i32, %c0_i32_0, %c0_i32_1 : i32, i32, i32
  }
  func.func @transform_2(%arg0: i32) -> (i32, i32) {
    %c0_i32 = arith.constant 0 : i32
    %c0_i32_0 = arith.constant 0 : i32
    %c0_i32_1 = arith.constant 0 : i32
    return %c0_i32, %c0_i32_0 : i32, i32
  }
  func.func @transform_3(%arg0: i32) -> (i32, i32) {
    %c0_i32 = arith.constant 0 : i32
    %c0_i32_0 = arith.constant 0 : i32
    %c0_i32_1 = arith.constant 0 : i32
    return %c0_i32, %c0_i32_0 : i32, i32
  }
  func.func @transform_4(%arg0: i32) -> (i32, i32, i32) {
    %c0_i32 = arith.constant 0 : i32
    %c0_i32_0 = arith.constant 0 : i32
    %c0_i32_1 = arith.constant 0 : i32
    %c0_i32_2 = arith.constant 0 : i32
    return %c0_i32, %c0_i32_0, %c0_i32_1 : i32, i32, i32
  }
  func.func @transform_5(%arg0: i32) -> (i32, i32) {
    %c0_i32 = arith.constant 0 : i32
    %c0_i32_0 = arith.constant 0 : i32
    %c0_i32_1 = arith.constant 0 : i32
    return %c0_i32, %c0_i32_0 : i32, i32
  }
  func.func @transform_6(%arg0: i32) -> (i32, i32) {
    %c0_i32 = arith.constant 0 : i32
    %c0_i32_0 = arith.constant 0 : i32
    %c0_i32_1 = arith.constant 0 : i32
    return %c0_i32, %c0_i32_0 : i32, i32
  }
  func.func @transform_7(%arg0: i32) -> (i32, i32, i32, i32) {
    %c0_i32 = arith.constant 0 : i32
    %c0_i32_0 = arith.constant 0 : i32
    %c0_i32_1 = arith.constant 0 : i32
    %c0_i32_2 = arith.constant 0 : i32
    return %arg0, %c0_i32, %c0_i32_0, %c0_i32_1 : i32, i32, i32, i32
  }
}

</mosaic_0001>

<llo_original>
// kernel: tpu_custom_call.1
$region0: #{tpu_custom_call.1}
  #allocation0 [shape = 'u32[]', space=smem, size = 0x4, offset = 0x4, fixed_abs, tag = 'smem constant byte address 0x4 - core index']
  #allocation1 [shape = 'u32[144,128]{1,0:T(1,128)}', space=vmem, size = 0x12000, scoped, tag = 'internal scratch']
  #allocation2 [shape = 'bf16[18,16,12]{2,1,0:T(16,128)(2,1)}', space=vmem, size = 0x12000, scoped, tag = 'scratch operand']
  #allocation3 [shape = 'bf16[18,16,12]{2,1,0:T(16,128)(2,1)}', space=vmem, size = 0x12000, scoped, tag = 'scratch operand']
  %s0 = inlined_call_operand.vmem [shape: f32[2,16,16,4], index: 0, kind: input, shape index: {}]
  %s1 = inlined_call_operand.vmem [shape: bf16[3,12,4], index: 1, kind: input, shape index: {}]
  %s2 = inlined_call_operand.vmem [shape: f32[1,4], index: 2, kind: input, shape index: {}]
  %s3 = inlined_call_operand.vmem [shape: f32[1,4], index: 3, kind: input, shape index: {}]
  %s4 = inlined_call_operand.vmem [shape: bf16[3,12,4], index: 4, kind: input, shape index: {}]
  %s5 = inlined_call_operand.vmem [shape: f32[1,4], index: 5, kind: input, shape index: {}]
  %s6 = inlined_call_operand.vmem [shape: f32[1,4], index: 6, kind: input, shape index: {}]
  %s7 = inlined_call_operand.vmem [shape: f32[2,16,16,4], index: 7, kind: output, shape index: {}]
  %s8 = sld [smem:[#allocation0]]
  $region61: #{tpu_custom_call.1} parent=0
    _
  %s10 = ssub.s32 1, %s8
  %s11 = scalar_select 0, %s10, %s8
  loop: start=0, step=1, limit=4
  $region2: #{tpu_custom_call.1} parent=0 // loop_pre_header
    _
  $region3: #{tpu_custom_call.1} parent=0 // loop_header
    %s13 = sphi 0, %s17
    %p14 = scmp.ge.s32.totalorder %s13, 4
    %s23 = sphi 0, %s25
    %s26 = sphi 0, %s23
    %s27 = sphi 0, %s26
    %s43 = sphi 0, %s27
    %s47 = sphi 0, %s47
    %s49 = sphi 0, %s47
    %s50 = sphi 0, %s49
    %s64 = sphi 0, %s50
    %s68 = sphi 0, %s68
    %s70 = sphi 0, %s68
    %s71 = sphi 0, %s70
    %s85 = sphi 0, %s71
    %s89 = sphi 0, %s89
    %s91 = sphi 0, %s89
    %s92 = sphi 0, %s91
    %s106 = sphi 0, %s92
    %s110 = sphi 0, %s110
    %s112 = sphi 0, %s110
    %s113 = sphi 0, %s112
    %s127 = sphi 0, %s113
    %s131 = sphi 0, %s131
    %s133 = sphi 0, %s131
    %s134 = sphi 0, %s133
    %s148 = sphi 0, %s134
    %s152 = sphi 0, %s152
    %s154 = sphi 0, %s152
    %s155 = sphi 0, %s154
    %s169 = sphi 0, %s155
    %s175 = sphi 0, %s177
    %s178 = sphi 0, %s175
    %s179 = sphi 0, %s178
    %s195 = sphi 0, %s179
  $region4: #{tpu_custom_call.1} parent=0 // loop_header_branch
    %16 = sbr.rel (%p14) target = $region8
  $region5: #{tpu_custom_call.1} parent=0 // loop_body
    %s18 = ssub.s32 %s13, 1
    %s19 = ssub.s32 %s13, 2
    %s20 = sadd.s32 %s13, 1
    %s21 = ssub.s32 %s13, %s20
    %p22 = scmp.eq.s32.totalorder %s21, 0
    %s24 = sadd.s32 %s23, 1
    %s25 = scalar_select %p22, %s23, %s24
    %p28 = pneg %p22
    %p29 = scmp.eq.s32.totalorder %s13, 1
    %p30 = por %p28, %p29
    %p31 = scmp.ne.s32.totalorder %s23, %s26
    %p32 = scmp.eq.s32.totalorder %s13, 0
    %p33 = por %p31, %p32
    %p34 = scmp.ne.s32.totalorder %s23, %s26
    %p35 = scmp.eq.s32.totalorder %s18, 1
    %p36 = por %p34, %p35
    %p37 = scmp.ne.s32.totalorder %s26, %s27
    %p38 = scmp.eq.s32.totalorder %s18, 0
    %p39 = por %p37, %p38
    %p40 = scmp.ne.s32.totalorder %s26, %s27
    %p41 = scmp.eq.s32.totalorder %s19, 1
    %p42 = por %p40, %p41
    %p44 = scmp.ne.s32.totalorder %s27, %s43
    %p45 = scmp.eq.s32.totalorder %s19, 0
    %p46 = por %p44, %p45
    %s48 = sadd.s32 %s47, 1
    %p51 = scmp.eq.s32.totalorder %s13, 1
    %p52 = scmp.ne.s32.totalorder %s47, %s49
    %p53 = scmp.eq.s32.totalorder %s13, 0
    %p54 = por %p52, %p53
    %p55 = scmp.ne.s32.totalorder %s47, %s49
    %p56 = scmp.eq.s32.totalorder %s18, 1
    %p57 = por %p55, %p56
    %p58 = scmp.ne.s32.totalorder %s49, %s50
    %p59 = scmp.eq.s32.totalorder %s18, 0
    %p60 = por %p58, %p59
    %p61 = scmp.ne.s32.totalorder %s49, %s50
    %p62 = scmp.eq.s32.totalorder %s19, 1
    %p63 = por %p61, %p62
    %p65 = scmp.ne.s32.totalorder %s50, %s64
    %p66 = scmp.eq.s32.totalorder %s19, 0
    %p67 = por %p65, %p66
    %s69 = sadd.s32 %s68, 1
    %p72 = scmp.eq.s32.totalorder %s13, 1
    %p73 = scmp.ne.s32.totalorder %s68, %s70
    %p74 = scmp.eq.s32.totalorder %s13, 0
    %p75 = por %p73, %p74
    %p76 = scmp.ne.s32.totalorder %s68, %s70
    %p77 = scmp.eq.s32.totalorder %s18, 1
    %p78 = por %p76, %p77
    %p79 = scmp.ne.s32.totalorder %s70, %s71
    %p80 = scmp.eq.s32.totalorder %s18, 0
    %p81 = por %p79, %p80
    %p82 = scmp.ne.s32.totalorder %s70, %s71
    %p83 = scmp.eq.s32.totalorder %s19, 1
    %p84 = por %p82, %p83
    %p86 = scmp.ne.s32.totalorder %s71, %s85
    %p87 = scmp.eq.s32.totalorder %s19, 0
    %p88 = por %p86, %p87
    %s90 = sadd.s32 %s89, 1
    %p93 = scmp.eq.s32.totalorder %s13, 1
    %p94 = scmp.ne.s32.totalorder %s89, %s91
    %p95 = scmp.eq.s32.totalorder %s13, 0
    %p96 = por %p94, %p95
    %p97 = scmp.ne.s32.totalorder %s89, %s91
    %p98 = scmp.eq.s32.totalorder %s18, 1
    %p99 = por %p97, %p98
    %p100 = scmp.ne.s32.totalorder %s91, %s92
    %p101 = scmp.eq.s32.totalorder %s18, 0
    %p102 = por %p100, %p101
    %p103 = scmp.ne.s32.totalorder %s91, %s92
    %p104 = scmp.eq.s32.totalorder %s19, 1
    %p105 = por %p103, %p104
    %p107 = scmp.ne.s32.totalorder %s92, %s106
    %p108 = scmp.eq.s32.totalorder %s19, 0
    %p109 = por %p107, %p108
    %s111 = sadd.s32 %s110, 1
    %p114 = scmp.eq.s32.totalorder %s13, 1
    %p115 = scmp.ne.s32.totalorder %s110, %s112
    %p116 = scmp.eq.s32.totalorder %s13, 0
    %p117 = por %p115, %p116
    %p118 = scmp.ne.s32.totalorder %s110, %s112
    %p119 = scmp.eq.s32.totalorder %s18, 1
    %p120 = por %p118, %p119
    %p121 = scmp.ne.s32.totalorder %s112, %s113
    %p122 = scmp.eq.s32.totalorder %s18, 0
    %p123 = por %p121, %p122
    %p124 = scmp.ne.s32.totalorder %s112, %s113
    %p125 = scmp.eq.s32.totalorder %s19, 1
    %p126 = por %p124, %p125
    %p128 = scmp.ne.s32.totalorder %s113, %s127
    %p129 = scmp.eq.s32.totalorder %s19, 0
    %p130 = por %p128, %p129
    %s132 = sadd.s32 %s131, 1
    %p135 = scmp.eq.s32.totalorder %s13, 1
    %p136 = scmp.ne.s32.totalorder %s131, %s133
    %p137 = scmp.eq.s32.totalorder %s13, 0
    %p138 = por %p136, %p137
    %p139 = scmp.ne.s32.totalorder %s131, %s133
    %p140 = scmp.eq.s32.totalorder %s18, 1
    %p141 = por %p139, %p140
    %p142 = scmp.ne.s32.totalorder %s133, %s134
    %p143 = scmp.eq.s32.totalorder %s18, 0
    %p144 = por %p142, %p143
    %p145 = scmp.ne.s32.totalorder %s133, %s134
    %p146 = scmp.eq.s32.totalorder %s19, 1
    %p147 = por %p145, %p146
    %p149 = scmp.ne.s32.totalorder %s134, %s148
    %p150 = scmp.eq.s32.totalorder %s19, 0
    %p151 = por %p149, %p150
    %s153 = sadd.s32 %s152, 1
    %p156 = scmp.eq.s32.totalorder %s13, 1
    %p157 = scmp.ne.s32.totalorder %s152, %s154
    %p158 = scmp.eq.s32.totalorder %s13, 0
    %p159 = por %p157, %p158
    %p160 = scmp.ne.s32.totalorder %s152, %s154
    %p161 = scmp.eq.s32.totalorder %s18, 1
    %p162 = por %p160, %p161
    %p163 = scmp.ne.s32.totalorder %s154, %s155
    %p164 = scmp.eq.s32.totalorder %s18, 0
    %p165 = por %p163, %p164
    %p166 = scmp.ne.s32.totalorder %s154, %s155
    %p167 = scmp.eq.s32.totalorder %s19, 1
    %p168 = por %p166, %p167
    %p170 = scmp.ne.s32.totalorder %s155, %s169
    %p171 = scmp.eq.s32.totalorder %s19, 0
    %p172 = por %p170, %p171
    %s173 = ssub.s32 %s13, %s20
    %p174 = scmp.eq.s32.totalorder %s173, 0
    %s176 = sadd.s32 %s175, 1
    %s177 = scalar_select %p174, %s175, %s176
    %p180 = pneg %p174
    %p181 = scmp.eq.s32.totalorder %s13, 1
    %p182 = por %p180, %p181
    %p183 = scmp.ne.s32.totalorder %s175, %s178
    %p184 = scmp.eq.s32.totalorder %s13, 0
    %p185 = por %p183, %p184
    %p186 = scmp.ne.s32.totalorder %s175, %s178
    %p187 = scmp.eq.s32.totalorder %s18, 1
    %p188 = por %p186, %p187
    %p189 = scmp.ne.s32.totalorder %s178, %s179
    %p190 = scmp.eq.s32.totalorder %s18, 0
    %p191 = por %p189, %p190
    %p192 = scmp.ne.s32.totalorder %s178, %s179
    %p193 = scmp.eq.s32.totalorder %s19, 1
    %p194 = por %p192, %p193
    %p196 = scmp.ne.s32.totalorder %s179, %s195
    %p197 = scmp.eq.s32.totalorder %s19, 0
    %p198 = por %p196, %p197
    %p199 = scmp.le.s32.totalorder 1, %s13
    %p200 = scmp.lt.s32.totalorder %s13, 3
    %p201 = pnand %p199, %p200
    %p202 = pneg %p201
    // Predicated region
    $region9: #{tpu_custom_call.1} parent=5 // pred_check
      _
    $region10: #{tpu_custom_call.1} parent=5 // pred_check_branch
      %204 = sbr.rel (%p201) target = $region12
    $region11: #{tpu_custom_call.1} parent=5 // pred_region
      %s205 = ssub.s32 %s13, 1
      // Predicated region
      $region13: #{tpu_custom_call.1} parent=11 // pred_check
        %p206 = pneg %p60
      $region14: #{tpu_custom_call.1} parent=11 // pred_check_branch
        %208 = sbr.rel (%p206) target = $region16
      $region15: #{tpu_custom_call.1} parent=11 // pred_region
        _
      $region16: #{tpu_custom_call.1} parent=11 // pred_fallthru
        _
      // Predicated region
      $region17: #{tpu_custom_call.1} parent=11 // pred_check
        %p209 = pneg %p81
      $region18: #{tpu_custom_call.1} parent=11 // pred_check_branch
        %211 = sbr.rel (%p209) target = $region20
      $region19: #{tpu_custom_call.1} parent=11 // pred_region
        _
      $region20: #{tpu_custom_call.1} parent=11 // pred_fallthru
        _
      // Predicated region
      $region21: #{tpu_custom_call.1} parent=11 // pred_check
        %p212 = pneg %p102
      $region22: #{tpu_custom_call.1} parent=11 // pred_check_branch
        %214 = sbr.rel (%p212) target = $region24
      $region23: #{tpu_custom_call.1} parent=11 // pred_region
        _
      $region24: #{tpu_custom_call.1} parent=11 // pred_fallthru
        _
      // Predicated region
      $region25: #{tpu_custom_call.1} parent=11 // pred_check
        %p215 = pneg %p123
      $region26: #{tpu_custom_call.1} parent=11 // pred_check_branch
        %217 = sbr.rel (%p215) target = $region28
      $region27: #{tpu_custom_call.1} parent=11 // pred_region
        _
      $region28: #{tpu_custom_call.1} parent=11 // pred_fallthru
        _
      // Predicated region
      $region29: #{tpu_custom_call.1} parent=11 // pred_check
        %p218 = pneg %p144
      $region30: #{tpu_custom_call.1} parent=11 // pred_check_branch
        %220 = sbr.rel (%p218) target = $region32
      $region31: #{tpu_custom_call.1} parent=11 // pred_region
        _
      $region32: #{tpu_custom_call.1} parent=11 // pred_fallthru
        _
      // Predicated region
      $region33: #{tpu_custom_call.1} parent=11 // pred_check
        %p221 = pneg %p165
      $region34: #{tpu_custom_call.1} parent=11 // pred_check_branch
        %223 = sbr.rel (%p221) target = $region36
      $region35: #{tpu_custom_call.1} parent=11 // pred_region
        _
      $region36: #{tpu_custom_call.1} parent=11 // pred_fallthru
        _
    $region12: #{tpu_custom_call.1} parent=5 // pred_fallthru
      _
    %p224 = scmp.lt.s32.totalorder %s13, 2
    // Predicated region
    $region37: #{tpu_custom_call.1} parent=5 // pred_check
      %p225 = pneg %p224
    $region38: #{tpu_custom_call.1} parent=5 // pred_check_branch
      %227 = sbr.rel (%p225) target = $region40
    $region39: #{tpu_custom_call.1} parent=5 // pred_region
      // Predicated region
      $region41: #{tpu_custom_call.1} parent=39 // pred_check
        %p228 = pneg %p33
      $region42: #{tpu_custom_call.1} parent=39 // pred_check_branch
        %230 = sbr.rel (%p228) target = $region44
      $region43: #{tpu_custom_call.1} parent=39 // pred_region
        %p231 = scmp.lt.s32.totalorder %s13, 1
        %s232 = scalar_select %p231, %s13, 1
        %s233 = smul.addr %s232, 32
        %s234 = smul.addr %s233, 8
        %s235 = scalar_lea.vmem %s0, %s234
      $region44: #{tpu_custom_call.1} parent=39 // pred_fallthru
        _
    $region40: #{tpu_custom_call.1} parent=5 // pred_fallthru
      _
    %p236 = scmp.le.s32.totalorder 1, %s13
    %p237 = scmp.lt.s32.totalorder %s13, 3
    %p238 = pnand %p236, %p237
    %p239 = pneg %p238
    // Predicated region
    $region45: #{tpu_custom_call.1} parent=5 // pred_check
      _
    $region46: #{tpu_custom_call.1} parent=5 // pred_check_branch
      %241 = sbr.rel (%p238) target = $region48
    $region47: #{tpu_custom_call.1} parent=5 // pred_region
      %s242 = ssub.s32 %s13, 1
      %p243 = scmp.lt.s32.totalorder %s18, 1
      %s244 = scalar_select %p243, %s18, 1
      %s245 = smul.addr %s244, 32
      %s246 = smul.addr %s245, 8
      %s247 = scalar_lea.vmem %s0, %s246
      %p248 = pneg %p39
      %p249 = pneg %p36
      %p250 = pneg %p60
      %p251 = pneg %p57
      %p252 = pneg %p81
      %p253 = pneg %p78
      %p254 = pneg %p102
      %p255 = pneg %p99
      %p256 = pneg %p123
      %p257 = pneg %p120
      %p258 = pneg %p144
      %p259 = pneg %p141
      %p260 = pneg %p165
      %p261 = pneg %p162
      %p262 = pneg %p191
      %p263 = pneg %p188
      %p264 = scmp.lt.s32.totalorder %s18, 1
      %s265 = scalar_select %p264, %s18, 1
      %s266 = smul.addr %s265, 32
      %s267 = smul.addr %s266, 8
      %s268 = scalar_lea.vmem %s7, %s267
      %p269 = scmp.lt.s32.totalorder %s18, 1
      %s270 = scalar_select %p269, %s18, 1
      %s271 = smul.addr %s270, 32
      %s272 = smul.addr %s271, 8
      %s273 = scalar_lea.vmem %s0, %s272
      %p274 = scmp.lt.s32.totalorder %s18, 1
      %s275 = scalar_select %p274, %s18, 1
      %s276 = smul.addr %s275, 32
      %s277 = smul.addr %s276, 8
      %s278 = scalar_lea.vmem %s7, %s277
      %v280 = vld [vmem:[%s273] sm:$0xff]
      %v281 = vld [vmem:[%s273 + $0x8] sm:$0xff]
      %v282 = vld [vmem:[%s273 + $0x10] sm:$0xff]
      %v283 = vld [vmem:[%s273 + $0x18] sm:$0xff]
      %v284 = vld [vmem:[%s273 + $0x20] sm:$0xff]
      %v285 = vld [vmem:[%s273 + $0x28] sm:$0xff]
      %v286 = vld [vmem:[%s273 + $0x30] sm:$0xff]
      %v287 = vld [vmem:[%s273 + $0x38] sm:$0xff]
      %v288 = vld [vmem:[%s273 + $0x40] sm:$0xff]
      %v289 = vld [vmem:[%s273 + $0x48] sm:$0xff]
      %v290 = vld [vmem:[%s273 + $0x50] sm:$0xff]
      %v291 = vld [vmem:[%s273 + $0x58] sm:$0xff]
      %v292 = vld [vmem:[%s273 + $0x60] sm:$0xff]
      %v293 = vld [vmem:[%s273 + $0x68] sm:$0xff]
      %v294 = vld [vmem:[%s273 + $0x70] sm:$0xff]
      %v295 = vld [vmem:[%s273 + $0x78] sm:$0xff]
      %v296 = vld [vmem:[%s273 + $0x80] sm:$0xff]
      %v297 = vld [vmem:[%s273 + $0x88] sm:$0xff]
      %v298 = vld [vmem:[%s273 + $0x90] sm:$0xff]
      %v299 = vld [vmem:[%s273 + $0x98] sm:$0xff]
      %v300 = vld [vmem:[%s273 + $0xa0] sm:$0xff]
      %v301 = vld [vmem:[%s273 + $0xa8] sm:$0xff]
      %v302 = vld [vmem:[%s273 + $0xb0] sm:$0xff]
      %v303 = vld [vmem:[%s273 + $0xb8] sm:$0xff]
      %v304 = vld [vmem:[%s273 + $0xc0] sm:$0xff]
      %v305 = vld [vmem:[%s273 + $0xc8] sm:$0xff]
      %v306 = vld [vmem:[%s273 + $0xd0] sm:$0xff]
      %v307 = vld [vmem:[%s273 + $0xd8] sm:$0xff]
      %v308 = vld [vmem:[%s273 + $0xe0] sm:$0xff]
      %v309 = vld [vmem:[%s273 + $0xe8] sm:$0xff]
      %v310 = vld [vmem:[%s273 + $0xf0] sm:$0xff]
      %v311 = vld [vmem:[%s273 + $0xf8] sm:$0xff]
      %vm344 = vcmask 1040384
      %v345 = vrot.slane %v280, 7
      %v346 = vrot.slane %v281, 7
      %v347 = vsel %vm344, %v345, %v346
      %v348 = vrot.slane %v282, 7
      %v349 = vrot.slane %v283, 7
      %v350 = vsel %vm344, %v348, %v349
      %v351 = vrot.slane %v284, 7
      %v352 = vrot.slane %v285, 7
      %v353 = vsel %vm344, %v351, %v352
      %v354 = vrot.slane %v286, 7
      %v355 = vrot.slane %v287, 7
      %v356 = vsel %vm344, %v354, %v355
      %v357 = vrot.slane %v288, 7
      %v358 = vrot.slane %v289, 7
      %v359 = vsel %vm344, %v357, %v358
      %v360 = vrot.slane %v290, 7
      %v361 = vrot.slane %v291, 7
      %v362 = vsel %vm344, %v360, %v361
      %v363 = vrot.slane %v292, 7
      %v364 = vrot.slane %v293, 7
      %v365 = vsel %vm344, %v363, %v364
      %v366 = vrot.slane %v294, 7
      %v367 = vrot.slane %v295, 7
      %v368 = vsel %vm344, %v366, %v367
      %v369 = vrot.slane %v296, 7
      %v370 = vrot.slane %v297, 7
      %v371 = vsel %vm344, %v369, %v370
      %v372 = vrot.slane %v298, 7
      %v373 = vrot.slane %v299, 7
      %v374 = vsel %vm344, %v372, %v373
      %v375 = vrot.slane %v300, 7
      %v376 = vrot.slane %v301, 7
      %v377 = vsel %vm344, %v375, %v376
      %v378 = vrot.slane %v302, 7
      %v379 = vrot.slane %v303, 7
      %v380 = vsel %vm344, %v378, %v379
      %v381 = vrot.slane %v304, 7
      %v382 = vrot.slane %v305, 7
      %v383 = vsel %vm344, %v381, %v382
      %v384 = vrot.slane %v306, 7
      %v385 = vrot.slane %v307, 7
      %v386 = vsel %vm344, %v384, %v385
      %v387 = vrot.slane %v308, 7
      %v388 = vrot.slane %v309, 7
      %v389 = vsel %vm344, %v387, %v388
      %v390 = vrot.slane %v310, 7
      %v391 = vrot.slane %v311, 7
      %v392 = vsel %vm344, %v390, %v391
      %v425 = vsel %vm344, 0.0, %v345
      %v426 = vsel %vm344, 0.0, %v348
      %v427 = vsel %vm344, 0.0, %v351
      %v428 = vsel %vm344, 0.0, %v354
      %v429 = vsel %vm344, 0.0, %v357
      %v430 = vsel %vm344, 0.0, %v360
      %v431 = vsel %vm344, 0.0, %v363
      %v432 = vsel %vm344, 0.0, %v366
      %v433 = vsel %vm344, 0.0, %v369
      %v434 = vsel %vm344, 0.0, %v372
      %v435 = vsel %vm344, 0.0, %v375
      %v436 = vsel %vm344, 0.0, %v378
      %v437 = vsel %vm344, 0.0, %v381
      %v438 = vsel %vm344, 0.0, %v384
      %v439 = vsel %vm344, 0.0, %v387
      %v440 = vsel %vm344, 0.0, %v390
      %vm441 = vcmask 1046528
      %v442 = vrot.slane %v280, 1
      %v443 = vrot.slane %v281, 1
      %v444 = vsel %vm441, %v442, %v443
      %v445 = vrot.slane %v282, 1
      %v446 = vrot.slane %v283, 1
      %v447 = vsel %vm441, %v445, %v446
      %v448 = vrot.slane %v284, 1
      %v449 = vrot.slane %v285, 1
      %v450 = vsel %vm441, %v448, %v449
      %v451 = vrot.slane %v286, 1
      %v452 = vrot.slane %v287, 1
      %v453 = vsel %vm441, %v451, %v452
      %v454 = vrot.slane %v288, 1
      %v455 = vrot.slane %v289, 1
      %v456 = vsel %vm441, %v454, %v455
      %v457 = vrot.slane %v290, 1
      %v458 = vrot.slane %v291, 1
      %v459 = vsel %vm441, %v457, %v458
      %v460 = vrot.slane %v292, 1
      %v461 = vrot.slane %v293, 1
      %v462 = vsel %vm441, %v460, %v461
      %v463 = vrot.slane %v294, 1
      %v464 = vrot.slane %v295, 1
      %v465 = vsel %vm441, %v463, %v464
      %v466 = vrot.slane %v296, 1
      %v467 = vrot.slane %v297, 1
      %v468 = vsel %vm441, %v466, %v467
      %v469 = vrot.slane %v298, 1
      %v470 = vrot.slane %v299, 1
      %v471 = vsel %vm441, %v469, %v470
      %v472 = vrot.slane %v300, 1
      %v473 = vrot.slane %v301, 1
      %v474 = vsel %vm441, %v472, %v473
      %v475 = vrot.slane %v302, 1
      %v476 = vrot.slane %v303, 1
      %v477 = vsel %vm441, %v475, %v476
      %v478 = vrot.slane %v304, 1
      %v479 = vrot.slane %v305, 1
      %v480 = vsel %vm441, %v478, %v479
      %v481 = vrot.slane %v306, 1
      %v482 = vrot.slane %v307, 1
      %v483 = vsel %vm441, %v481, %v482
      %v484 = vrot.slane %v308, 1
      %v485 = vrot.slane %v309, 1
      %v486 = vsel %vm441, %v484, %v485
      %v487 = vrot.slane %v310, 1
      %v488 = vrot.slane %v311, 1
      %v489 = vsel %vm441, %v487, %v488
      %v506 = vsel %vm441, %v443, 0.0
      %v507 = vsel %vm441, %v446, 0.0
      %v508 = vsel %vm441, %v449, 0.0
      %v509 = vsel %vm441, %v452, 0.0
      %v510 = vsel %vm441, %v455, 0.0
      %v511 = vsel %vm441, %v458, 0.0
      %v512 = vsel %vm441, %v461, 0.0
      %v513 = vsel %vm441, %v464, 0.0
      %v514 = vsel %vm441, %v467, 0.0
      %v515 = vsel %vm441, %v470, 0.0
      %v516 = vsel %vm441, %v473, 0.0
      %v517 = vsel %vm441, %v476, 0.0
      %v518 = vsel %vm441, %v479, 0.0
      %v519 = vsel %vm441, %v482, 0.0
      %v520 = vsel %vm441, %v485, 0.0
      %v521 = vsel %vm441, %v488, 0.0
      %522 = vrot.lane.b32.xlu0 %v280, 4
      %v523 = vpop.permute.xlu0 %522
      %524 = vrot.lane.b32.xlu0 %v281, 4
      %v525 = vpop.permute.xlu0 %524
      %526 = vrot.lane.b32.xlu0 %v282, 4
      %v527 = vpop.permute.xlu0 %526
      %528 = vrot.lane.b32.xlu0 %v283, 4
      %v529 = vpop.permute.xlu0 %528
      %530 = vrot.lane.b32.xlu0 %v284, 4
      %v531 = vpop.permute.xlu0 %530
      %532 = vrot.lane.b32.xlu0 %v285, 4
      %v533 = vpop.permute.xlu0 %532
      %534 = vrot.lane.b32.xlu0 %v286, 4
      %v535 = vpop.permute.xlu0 %534
      %536 = vrot.lane.b32.xlu0 %v287, 4
      %v537 = vpop.permute.xlu0 %536
      %538 = vrot.lane.b32.xlu0 %v288, 4
      %v539 = vpop.permute.xlu0 %538
      %540 = vrot.lane.b32.xlu0 %v289, 4
      %v541 = vpop.permute.xlu0 %540
      %542 = vrot.lane.b32.xlu0 %v290, 4
      %v543 = vpop.permute.xlu0 %542
      %544 = vrot.lane.b32.xlu0 %v291, 4
      %v545 = vpop.permute.xlu0 %544
      %546 = vrot.lane.b32.xlu0 %v292, 4
      %v547 = vpop.permute.xlu0 %546
      %548 = vrot.lane.b32.xlu0 %v293, 4
      %v549 = vpop.permute.xlu0 %548
      %550 = vrot.lane.b32.xlu0 %v294, 4
      %v551 = vpop.permute.xlu0 %550
      %552 = vrot.lane.b32.xlu0 %v295, 4
      %v553 = vpop.permute.xlu0 %552
      %554 = vrot.lane.b32.xlu0 %v296, 4
      %v555 = vpop.permute.xlu0 %554
      %556 = vrot.lane.b32.xlu0 %v297, 4
      %v557 = vpop.permute.xlu0 %556
      %558 = vrot.lane.b32.xlu0 %v298, 4
      %v559 = vpop.permute.xlu0 %558
      %560 = vrot.lane.b32.xlu0 %v299, 4
      %v561 = vpop.permute.xlu0 %560
      %562 = vrot.lane.b32.xlu0 %v300, 4
      %v563 = vpop.permute.xlu0 %562
      %564 = vrot.lane.b32.xlu0 %v301, 4
      %v565 = vpop.permute.xlu0 %564
      %566 = vrot.lane.b32.xlu0 %v302, 4
      %v567 = vpop.permute.xlu0 %566
      %568 = vrot.lane.b32.xlu0 %v303, 4
      %v569 = vpop.permute.xlu0 %568
      %570 = vrot.lane.b32.xlu0 %v304, 4
      %v571 = vpop.permute.xlu0 %570
      %572 = vrot.lane.b32.xlu0 %v305, 4
      %v573 = vpop.permute.xlu0 %572
      %574 = vrot.lane.b32.xlu0 %v306, 4
      %v575 = vpop.permute.xlu0 %574
      %576 = vrot.lane.b32.xlu0 %v307, 4
      %v577 = vpop.permute.xlu0 %576
      %578 = vrot.lane.b32.xlu0 %v308, 4
      %v579 = vpop.permute.xlu0 %578
      %580 = vrot.lane.b32.xlu0 %v309, 4
      %v581 = vpop.permute.xlu0 %580
      %582 = vrot.lane.b32.xlu0 %v310, 4
      %v583 = vpop.permute.xlu0 %582
      %584 = vrot.lane.b32.xlu0 %v311, 4
      %v585 = vpop.permute.xlu0 %584
      %634 = vrot.lane.b32.xlu0 %v444, 8
      %v635 = vpop.permute.xlu0 %634
      %636 = vrot.lane.b32.xlu0 %v506, 8
      %v637 = vpop.permute.xlu0 %636
      %638 = vrot.lane.b32.xlu0 %v447, 8
      %v639 = vpop.permute.xlu0 %638
      %640 = vrot.lane.b32.xlu0 %v507, 8
      %v641 = vpop.permute.xlu0 %640
      %642 = vrot.lane.b32.xlu0 %v450, 8
      %v643 = vpop.permute.xlu0 %642
      %644 = vrot.lane.b32.xlu0 %v508, 8
      %v645 = vpop.permute.xlu0 %644
      %646 = vrot.lane.b32.xlu0 %v453, 8
      %v647 = vpop.permute.xlu0 %646
      %648 = vrot.lane.b32.xlu0 %v509, 8
      %v649 = vpop.permute.xlu0 %648
      %650 = vrot.lane.b32.xlu0 %v456, 8
      %v651 = vpop.permute.xlu0 %650
      %652 = vrot.lane.b32.xlu0 %v510, 8
      %v653 = vpop.permute.xlu0 %652
      %654 = vrot.lane.b32.xlu0 %v459, 8
      %v655 = vpop.permute.xlu0 %654
      %656 = vrot.lane.b32.xlu0 %v511, 8
      %v657 = vpop.permute.xlu0 %656
      %658 = vrot.lane.b32.xlu0 %v462, 8
      %v659 = vpop.permute.xlu0 %658
      %660 = vrot.lane.b32.xlu0 %v512, 8
      %v661 = vpop.permute.xlu0 %660
      %662 = vrot.lane.b32.xlu0 %v465, 8
      %v663 = vpop.permute.xlu0 %662
      %664 = vrot.lane.b32.xlu0 %v513, 8
      %v665 = vpop.permute.xlu0 %664
      %666 = vrot.lane.b32.xlu0 %v468, 8
      %v667 = vpop.permute.xlu0 %666
      %668 = vrot.lane.b32.xlu0 %v514, 8
      %v669 = vpop.permute.xlu0 %668
      %670 = vrot.lane.b32.xlu0 %v471, 8
      %v671 = vpop.permute.xlu0 %670
      %672 = vrot.lane.b32.xlu0 %v515, 8
      %v673 = vpop.permute.xlu0 %672
      %674 = vrot.lane.b32.xlu0 %v474, 8
      %v675 = vpop.permute.xlu0 %674
      %676 = vrot.lane.b32.xlu0 %v516, 8
      %v677 = vpop.permute.xlu0 %676
      %678 = vrot.lane.b32.xlu0 %v477, 8
      %v679 = vpop.permute.xlu0 %678
      %680 = vrot.lane.b32.xlu0 %v517, 8
      %v681 = vpop.permute.xlu0 %680
      %682 = vrot.lane.b32.xlu0 %v480, 8
      %v683 = vpop.permute.xlu0 %682
      %684 = vrot.lane.b32.xlu0 %v518, 8
      %v685 = vpop.permute.xlu0 %684
      %686 = vrot.lane.b32.xlu0 %v483, 8
      %v687 = vpop.permute.xlu0 %686
      %688 = vrot.lane.b32.xlu0 %v519, 8
      %v689 = vpop.permute.xlu0 %688
      %690 = vrot.lane.b32.xlu0 %v486, 8
      %v691 = vpop.permute.xlu0 %690
      %692 = vrot.lane.b32.xlu0 %v520, 8
      %v693 = vpop.permute.xlu0 %692
      %694 = vrot.lane.b32.xlu0 %v489, 8
      %v695 = vpop.permute.xlu0 %694
      %696 = vrot.lane.b32.xlu0 %v521, 8
      %v697 = vpop.permute.xlu0 %696
      %vm730 = vcmask 31744
      %v731 = vsel %vm730, %v425, %v523
      %v732 = vsel %vm730, %v347, %v525
      %v733 = vsel %vm730, %v426, %v527
      %v734 = vsel %vm730, %v350, %v529
      %v735 = vsel %vm730, %v427, %v531
      %v736 = vsel %vm730, %v353, %v533
      %v737 = vsel %vm730, %v428, %v535
      %v738 = vsel %vm730, %v356, %v537
      %v739 = vsel %vm730, %v429, %v539
      %v740 = vsel %vm730, %v359, %v541
      %v741 = vsel %vm730, %v430, %v543
      %v742 = vsel %vm730, %v362, %v545
      %v743 = vsel %vm730, %v431, %v547
      %v744 = vsel %vm730, %v365, %v549
      %v745 = vsel %vm730, %v432, %v551
      %v746 = vsel %vm730, %v368, %v553
      %v747 = vsel %vm730, %v433, %v555
      %v748 = vsel %vm730, %v371, %v557
      %v749 = vsel %vm730, %v434, %v559
      %v750 = vsel %vm730, %v374, %v561
      %v751 = vsel %vm730, %v435, %v563
      %v752 = vsel %vm730, %v377, %v565
      %v753 = vsel %vm730, %v436, %v567
      %v754 = vsel %vm730, %v380, %v569
      %v755 = vsel %vm730, %v437, %v571
      %v756 = vsel %vm730, %v383, %v573
      %v757 = vsel %vm730, %v438, %v575
      %v758 = vsel %vm730, %v386, %v577
      %v759 = vsel %vm730, %v439, %v579
      %v760 = vsel %vm730, %v389, %v581
      %v761 = vsel %vm730, %v440, %v583
      %v762 = vsel %vm730, %v392, %v585
      %vm763 = vcmask 64512
      %v764 = vsel %vm763, %v731, %v635
      %v765 = vsel %vm763, %v732, %v637
      %v766 = vsel %vm763, %v733, %v639
      %v767 = vsel %vm763, %v734, %v641
      %v768 = vsel %vm763, %v735, %v643
      %v769 = vsel %vm763, %v736, %v645
      %v770 = vsel %vm763, %v737, %v647
      %v771 = vsel %vm763, %v738, %v649
      %v772 = vsel %vm763, %v739, %v651
      %v773 = vsel %vm763, %v740, %v653
      %v774 = vsel %vm763, %v741, %v655
      %v775 = vsel %vm763, %v742, %v657
      %v776 = vsel %vm763, %v743, %v659
      %v777 = vsel %vm763, %v744, %v661
      %v778 = vsel %vm763, %v745, %v663
      %v779 = vsel %vm763, %v746, %v665
      %v780 = vsel %vm763, %v747, %v667
      %v781 = vsel %vm763, %v748, %v669
      %v782 = vsel %vm763, %v749, %v671
      %v783 = vsel %vm763, %v750, %v673
      %v784 = vsel %vm763, %v751, %v675
      %v785 = vsel %vm763, %v752, %v677
      %v786 = vsel %vm763, %v753, %v679
      %v787 = vsel %vm763, %v754, %v681
      %v788 = vsel %vm763, %v755, %v683
      %v789 = vsel %vm763, %v756, %v685
      %v790 = vsel %vm763, %v757, %v687
      %v791 = vsel %vm763, %v758, %v689
      %v792 = vsel %vm763, %v759, %v691
      %v793 = vsel %vm763, %v760, %v693
      %v794 = vsel %vm763, %v761, %v695
      %v795 = vsel %vm763, %v762, %v697
      %vm796 = vcmask 97280
      %797 = vst.msk [vmem:[#allocation2] sm:$0xff] %vm796, 0
      %s798 = scalar_lea.vmem [#allocation2], 136
      %799 = vst.msk [vmem:[%s798] sm:$0xff] %vm796, 0
      %v800 = vpack.c.bf16 %v765, %v764
      %v801 = vpack.c.bf16 %v767, %v766
      %v802 = vpack.c.bf16 %v769, %v768
      %v803 = vpack.c.bf16 %v771, %v770
      %v804 = vpack.c.bf16 %v773, %v772
      %v805 = vpack.c.bf16 %v775, %v774
      %v806 = vpack.c.bf16 %v777, %v776
      %v807 = vpack.c.bf16 %v779, %v778
      %v808 = vpack.c.bf16 %v781, %v780
      %v809 = vpack.c.bf16 %v783, %v782
      %v810 = vpack.c.bf16 %v785, %v784
      %v811 = vpack.c.bf16 %v787, %v786
      %v812 = vpack.c.bf16 %v789, %v788
      %v813 = vpack.c.bf16 %v791, %v790
      %v814 = vpack.c.bf16 %v793, %v792
      %v815 = vpack.c.bf16 %v795, %v794
      %s816 = scalar_lea.vmem [#allocation2], 8
      %817 = vst.msk [vmem:[%s816] sm:$0xff] %vm796, %v800
      %818 = vst.msk [vmem:[%s816 + $0x8] sm:$0xff] %vm796, %v801
      %819 = vst.msk [vmem:[%s816 + $0x10] sm:$0xff] %vm796, %v802
      %820 = vst.msk [vmem:[%s816 + $0x18] sm:$0xff] %vm796, %v803
      %821 = vst.msk [vmem:[%s816 + $0x20] sm:$0xff] %vm796, %v804
      %822 = vst.msk [vmem:[%s816 + $0x28] sm:$0xff] %vm796, %v805
      %823 = vst.msk [vmem:[%s816 + $0x30] sm:$0xff] %vm796, %v806
      %824 = vst.msk [vmem:[%s816 + $0x38] sm:$0xff] %vm796, %v807
      %825 = vst.msk [vmem:[%s816 + $0x40] sm:$0xff] %vm796, %v808
      %826 = vst.msk [vmem:[%s816 + $0x48] sm:$0xff] %vm796, %v809
      %827 = vst.msk [vmem:[%s816 + $0x50] sm:$0xff] %vm796, %v810
      %828 = vst.msk [vmem:[%s816 + $0x58] sm:$0xff] %vm796, %v811
      %829 = vst.msk [vmem:[%s816 + $0x60] sm:$0xff] %vm796, %v812
      %830 = vst.msk [vmem:[%s816 + $0x68] sm:$0xff] %vm796, %v813
      %831 = vst.msk [vmem:[%s816 + $0x70] sm:$0xff] %vm796, %v814
      %832 = vst.msk [vmem:[%s816 + $0x78] sm:$0xff] %vm796, %v815
      %v833 = vld [vmem:[#allocation2] sm:$0xff]
      %v834 = vld [vmem:[#allocation2 + $0x8] sm:$0xff]
      %v835 = vld [vmem:[#allocation2 + $0x10] sm:$0xff]
      %v836 = vld [vmem:[#allocation2 + $0x18] sm:$0xff]
      %v837 = vld [vmem:[#allocation2 + $0x20] sm:$0xff]
      %v838 = vld [vmem:[#allocation2 + $0x28] sm:$0xff]
      %v839 = vld [vmem:[#allocation2 + $0x30] sm:$0xff]
      %v840 = vld [vmem:[#allocation2 + $0x38] sm:$0xff]
      %v841 = vld [vmem:[#allocation2 + $0x40] sm:$0xff]
      %v842 = vld [vmem:[#allocation2 + $0x48] sm:$0xff]
      %v843 = vld [vmem:[#allocation2 + $0x50] sm:$0xff]
      %v844 = vld [vmem:[#allocation2 + $0x58] sm:$0xff]
      %v845 = vld [vmem:[#allocation2 + $0x60] sm:$0xff]
      %v846 = vld [vmem:[#allocation2 + $0x68] sm:$0xff]
      %v847 = vld [vmem:[#allocation2 + $0x70] sm:$0xff]
      %v848 = vld [vmem:[#allocation2 + $0x78] sm:$0xff]
      %v849 = vld [vmem:[%s1] sm:$0xf]
      %v850 = vld [vmem:[%s1 + $0x4] sm:$0x3]
      %v851 = vld [vmem:[%s816] sm:$0xff]
      %v852 = vld [vmem:[%s816 + $0x8] sm:$0xff]
      %v853 = vld [vmem:[%s816 + $0x10] sm:$0xff]
      %v854 = vld [vmem:[%s816 + $0x18] sm:$0xff]
      %v855 = vld [vmem:[%s816 + $0x20] sm:$0xff]
      %v856 = vld [vmem:[%s816 + $0x28] sm:$0xff]
      %v857 = vld [vmem:[%s816 + $0x30] sm:$0xff]
      %v858 = vld [vmem:[%s816 + $0x38] sm:$0xff]
      %v859 = vld [vmem:[%s816 + $0x40] sm:$0xff]
      %v860 = vld [vmem:[%s816 + $0x48] sm:$0xff]
      %v861 = vld [vmem:[%s816 + $0x50] sm:$0xff]
      %v862 = vld [vmem:[%s816 + $0x58] sm:$0xff]
      %v863 = vld [vmem:[%s816 + $0x60] sm:$0xff]
      %v864 = vld [vmem:[%s816 + $0x68] sm:$0xff]
      %v865 = vld [vmem:[%s816 + $0x70] sm:$0xff]
      %v866 = vld [vmem:[%s816 + $0x78] sm:$0xff]
      %s867 = scalar_lea.vmem %s1, 8
      %v868 = vld [vmem:[%s867] sm:$0xf]
      %v869 = vld [vmem:[%s867 + $0x4] sm:$0x3]
      %v872 = vunpack.c.l.b16 %v868
      %v873 = vunpack.c.l.b16 %v869
      %v874 = vpack.c.b16 %v873, %v872
      %v876 = vsel %vm796, %v851, 0
      %v879 = vsel %vm796, %v852, 0
      %v882 = vsel %vm796, %v853, 0
      %v885 = vsel %vm796, %v854, 0
      %v888 = vsel %vm796, %v855, 0
      %v891 = vsel %vm796, %v856, 0
      %v894 = vsel %vm796, %v857, 0
      %v897 = vsel %vm796, %v858, 0
      %v900 = vsel %vm796, %v859, 0
      %v903 = vsel %vm796, %v860, 0
      %v906 = vsel %vm796, %v861, 0
      %v909 = vsel %vm796, %v862, 0
      %v912 = vsel %vm796, %v863, 0
      %v915 = vsel %vm796, %v864, 0
      %v918 = vsel %vm796, %v865, 0
      %v921 = vsel %vm796, %v866, 0
      %vm923 = vcmask 1045504
      %v925 = vsel %vm923, %v874, 0
      %927 = vmatprep.subr.bf16.mxu0 0
      %928 = vmatpush1.bf16.msra.mxu0 %v925
      %929 = vmatprep.subr.bf16.mxu0 0
      %930 = vmatpush1.bf16.msra.mxu0 0
      %931 = vmatprep.subr.bf16.mxu0 0
      %932 = vmatpush1.bf16.msra.mxu0 0
      %933 = vmatprep.subr.bf16.mxu0 0
      %934 = vmatpush1.bf16.msra.mxu0 0
      %935 = vmatprep.subr.bf16.mxu0 0
      %936 = vmatpush1.bf16.msra.mxu0 0
      %937 = vmatprep.subr.bf16.mxu0 0
      %938 = vmatpush1.bf16.msra.mxu0 0
      %939 = vmatprep.subr.bf16.mxu0 0
      %940 = vmatpush1.bf16.msra.mxu0 0
      %941 = vmatprep.subr.bf16.mxu0 0
      %942 = vmatpush1.bf16.msra.mxu0 0
      %943 = vmatprep.subr.bf16.mxu0 0
      %944 = vmatpush1.bf16.msra.mxu0 0
      %945 = vmatprep.subr.bf16.mxu0 0
      %946 = vmatpush1.bf16.msra.mxu0 0
      %947 = vmatprep.subr.bf16.mxu0 0
      %948 = vmatpush1.bf16.msra.mxu0 0
      %949 = vmatprep.subr.bf16.mxu0 0
      %950 = vmatpush1.bf16.msra.mxu0 0
      %951 = vmatprep.subr.bf16.mxu0 0
      %952 = vmatpush1.bf16.msra.mxu0 0
      %953 = vmatprep.subr.bf16.mxu0 0
      %954 = vmatpush1.bf16.msra.mxu0 0
      %955 = vmatprep.subr.bf16.mxu0 0
      %956 = vmatpush1.bf16.msra.mxu0 0
      %957 = vmatprep.subr.bf16.mxu0 0
      %958 = vmatpush1.bf16.msra.mxu0 0
      %959 = vmatprep.mubr.bf16.mxu0 0
      %960 = vmatmul.mubr.bf16.gmra.mrb[0].mxu0 %v876
      %v961 = vpop.f32.mrb[0].mxu0
      %v962 = vadd.f32 0.0, %v961
      %v963 = vpop.f32.mrb[0].mxu0
      %v964 = vpop.f32.mrb[0].mxu0
      %v965 = vadd.f32 0.0, %v964
      %v966 = vpop.f32.mrb[0].mxu0
      %967 = vmatprep.mubr.bf16.mxu0 0
      %968 = vmatmul.mubr.bf16.gmra.mrb[0].mxu0 %v879
      %v969 = vpop.f32.mrb[0].mxu0
      %v970 = vadd.f32 0.0, %v969
      %v971 = vpop.f32.mrb[0].mxu0
      %v972 = vpop.f32.mrb[0].mxu0
      %v973 = vadd.f32 0.0, %v972
      %v974 = vpop.f32.mrb[0].mxu0
      %975 = vmatprep.mubr.bf16.mxu0 0
      %976 = vmatmul.mubr.bf16.gmra.mrb[0].mxu0 %v882
      %v977 = vpop.f32.mrb[0].mxu0
      %v978 = vadd.f32 0.0, %v977
      %v979 = vpop.f32.mrb[0].mxu0
      %v980 = vpop.f32.mrb[0].mxu0
      %v981 = vadd.f32 0.0, %v980
      %v982 = vpop.f32.mrb[0].mxu0
      %983 = vmatprep.mubr.bf16.mxu0 0
      %984 = vmatmul.mubr.bf16.gmra.mrb[0].mxu0 %v885
      %v985 = vpop.f32.mrb[0].mxu0
      %v986 = vadd.f32 0.0, %v985
      %v987 = vpop.f32.mrb[0].mxu0
      %v988 = vpop.f32.mrb[0].mxu0
      %v989 = vadd.f32 0.0, %v988
      %v990 = vpop.f32.mrb[0].mxu0
      %991 = vmatprep.mubr.bf16.mxu0 0
      %992 = vmatmul.mubr.bf16.gmra.mrb[0].mxu0 %v888
      %v993 = vpop.f32.mrb[0].mxu0
      %v994 = vadd.f32 0.0, %v993
      %v995 = vpop.f32.mrb[0].mxu0
      %v996 = vpop.f32.mrb[0].mxu0
      %v997 = vadd.f32 0.0, %v996
      %v998 = vpop.f32.mrb[0].mxu0
      %999 = vmatprep.mubr.bf16.mxu0 0
      %1000 = vmatmul.mubr.bf16.gmra.mrb[0].mxu0 %v891
      %v1001 = vpop.f32.mrb[0].mxu0
      %v1002 = vadd.f32 0.0, %v1001
      %v1003 = vpop.f32.mrb[0].mxu0
      %v1004 = vpop.f32.mrb[0].mxu0
      %v1005 = vadd.f32 0.0, %v1004
      %v1006 = vpop.f32.mrb[0].mxu0
      %1007 = vmatprep.mubr.bf16.mxu0 0
      %1008 = vmatmul.mubr.bf16.gmra.mrb[0].mxu0 %v894
      %v1009 = vpop.f32.mrb[0].mxu0
      %v1010 = vadd.f32 0.0, %v1009
      %v1011 = vpop.f32.mrb[0].mxu0
      %v1012 = vpop.f32.mrb[0].mxu0
      %v1013 = vadd.f32 0.0, %v1012
      %v1014 = vpop.f32.mrb[0].mxu0
      %1015 = vmatprep.mubr.bf16.mxu0 0
      %1016 = vmatmul.mubr.bf16.gmra.mrb[0].mxu0 %v897
      %v1017 = vpop.f32.mrb[0].mxu0
      %v1018 = vadd.f32 0.0, %v1017
      %v1019 = vpop.f32.mrb[0].mxu0
      %v1020 = vpop.f32.mrb[0].mxu0
      %v1021 = vadd.f32 0.0, %v1020
      %v1022 = vpop.f32.mrb[0].mxu0
      %1023 = vmatprep.mubr.bf16.mxu0 0
      %1024 = vmatmul.mubr.bf16.gmra.mrb[0].mxu0 %v900
      %v1025 = vpop.f32.mrb[0].mxu0
      %v1026 = vadd.f32 0.0, %v1025
      %v1027 = vpop.f32.mrb[0].mxu0
      %v1028 = vpop.f32.mrb[0].mxu0
      %v1029 = vadd.f32 0.0, %v1028
      %v1030 = vpop.f32.mrb[0].mxu0
      %1031 = vmatprep.mubr.bf16.mxu0 0
      %1032 = vmatmul.mubr.bf16.gmra.mrb[0].mxu0 %v903
      %v1033 = vpop.f32.mrb[0].mxu0
      %v1034 = vadd.f32 0.0, %v1033
      %v1035 = vpop.f32.mrb[0].mxu0
      %v1036 = vpop.f32.mrb[0].mxu0
      %v1037 = vadd.f32 0.0, %v1036
      %v1038 = vpop.f32.mrb[0].mxu0
      %1039 = vmatprep.mubr.bf16.mxu0 0
      %1040 = vmatmul.mubr.bf16.gmra.mrb[0].mxu0 %v906
      %v1041 = vpop.f32.mrb[0].mxu0
      %v1042 = vadd.f32 0.0, %v1041
      %v1043 = vpop.f32.mrb[0].mxu0
      %v1044 = vpop.f32.mrb[0].mxu0
      %v1045 = vadd.f32 0.0, %v1044
      %v1046 = vpop.f32.mrb[0].mxu0
      %1047 = vmatprep.mubr.bf16.mxu0 0
      %1048 = vmatmul.mubr.bf16.gmra.mrb[0].mxu0 %v909
      %v1049 = vpop.f32.mrb[0].mxu0
      %v1050 = vadd.f32 0.0, %v1049
      %v1051 = vpop.f32.mrb[0].mxu0
      %v1052 = vpop.f32.mrb[0].mxu0
      %v1053 = vadd.f32 0.0, %v1052
      %v1054 = vpop.f32.mrb[0].mxu0
      %1055 = vmatprep.mubr.bf16.mxu0 0
      %1056 = vmatmul.mubr.bf16.gmra.mrb[0].mxu0 %v912
      %v1057 = vpop.f32.mrb[0].mxu0
      %v1058 = vadd.f32 0.0, %v1057
      %v1059 = vpop.f32.mrb[0].mxu0
      %v1060 = vpop.f32.mrb[0].mxu0
      %v1061 = vadd.f32 0.0, %v1060
      %v1062 = vpop.f32.mrb[0].mxu0
      %1063 = vmatprep.mubr.bf16.mxu0 0
      %1064 = vmatmul.mubr.bf16.gmra.mrb[0].mxu0 %v915
      %v1065 = vpop.f32.mrb[0].mxu0
      %v1066 = vadd.f32 0.0, %v1065
      %v1067 = vpop.f32.mrb[0].mxu0
      %v1068 = vpop.f32.mrb[0].mxu0
      %v1069 = vadd.f32 0.0, %v1068
      %v1070 = vpop.f32.mrb[0].mxu0
      %1071 = vmatprep.mubr.bf16.mxu0 0
      %1072 = vmatmul.mubr.bf16.gmra.mrb[0].mxu0 %v918
      %v1073 = vpop.f32.mrb[0].mxu0
      %v1074 = vadd.f32 0.0, %v1073
      %v1075 = vpop.f32.mrb[0].mxu0
      %v1076 = vpop.f32.mrb[0].mxu0
      %v1077 = vadd.f32 0.0, %v1076
      %v1078 = vpop.f32.mrb[0].mxu0
      %1079 = vmatprep.mubr.bf16.mxu0 0
      %1080 = vmatmul.mubr.bf16.gmra.mrb[0].mxu0 %v921
      %v1081 = vpop.f32.mrb[0].mxu0
      %v1082 = vadd.f32 0.0, %v1081
      %v1083 = vpop.f32.mrb[0].mxu0
      %v1084 = vpop.f32.mrb[0].mxu0
      %v1085 = vadd.f32 0.0, %v1084
      %v1086 = vpop.f32.mrb[0].mxu0
      %1087 = vdwg.mxu0
      %v1090 = vunpack.c.l.b16 %v849
      %v1091 = vunpack.c.l.b16 %v850
      %v1092 = vpack.c.b16 %v1091, %v1090
      %v1094 = vsel %vm796, %v833, 0
      %v1097 = vsel %vm796, %v834, 0
      %v1100 = vsel %vm796, %v835, 0
      %v1103 = vsel %vm796, %v836, 0
      %v1106 = vsel %vm796, %v837, 0
      %v1109 = vsel %vm796, %v838, 0
      %v1112 = vsel %vm796, %v839, 0
      %v1115 = vsel %vm796, %v840, 0
      %v1118 = vsel %vm796, %v841, 0
      %v1121 = vsel %vm796, %v842, 0
      %v1124 = vsel %vm796, %v843, 0
      %v1127 = vsel %vm796, %v844, 0
      %v1130 = vsel %vm796, %v845, 0
      %v1133 = vsel %vm796, %v846, 0
      %v1136 = vsel %vm796, %v847, 0
      %v1139 = vsel %vm796, %v848, 0
      %v1142 = vsel %vm923, %v1092, 0
      %1144 = vmatprep.subr.bf16.mxu0 0
      %1145 = vmatpush1.bf16.msra.mxu0 %v1142
      %1146 = vmatprep.subr.bf16.mxu0 0
      %1147 = vmatpush1.bf16.msra.mxu0 0
      %1148 = vmatprep.subr.bf16.mxu0 0
      %1149 = vmatpush1.bf16.msra.mxu0 0
      %1150 = vmatprep.subr.bf16.mxu0 0
      %1151 = vmatpush1.bf16.msra.mxu0 0
      %1152 = vmatprep.subr.bf16.mxu0 0
      %1153 = vmatpush1.bf16.msra.mxu0 0
      %1154 = vmatprep.subr.bf16.mxu0 0
      %1155 = vmatpush1.bf16.msra.mxu0 0
      %1156 = vmatprep.subr.bf16.mxu0 0
      %1157 = vmatpush1.bf16.msra.mxu0 0
      %1158 = vmatprep.subr.bf16.mxu0 0
      %1159 = vmatpush1.bf16.msra.mxu0 0
      %1160 = vmatprep.subr.bf16.mxu0 0
      %1161 = vmatpush1.bf16.msra.mxu0 0
      %1162 = vmatprep.subr.bf16.mxu0 0
      %1163 = vmatpush1.bf16.msra.mxu0 0
      %1164 = vmatprep.subr.bf16.mxu0 0
      %1165 = vmatpush1.bf16.msra.mxu0 0
      %1166 = vmatprep.subr.bf16.mxu0 0
      %1167 = vmatpush1.bf16.msra.mxu0 0
      %1168 = vmatprep.subr.bf16.mxu0 0
      %1169 = vmatpush1.bf16.msra.mxu0 0
      %1170 = vmatprep.subr.bf16.mxu0 0
      %1171 = vmatpush1.bf16.msra.mxu0 0
      %1172 = vmatprep.subr.bf16.mxu0 0
      %1173 = vmatpush1.bf16.msra.mxu0 0
      %1174 = vmatprep.subr.bf16.mxu0 0
      %1175 = vmatpush1.bf16.msra.mxu0 0
      %1176 = vmatprep.mubr.bf16.mxu0 0
      %1177 = vmatmul.mubr.bf16.gmra.mrb[0].mxu0 %v1094
      %v1178 = vpop.f32.mrb[0].mxu0
      %v1179 = vadd.f32 %v962, %v1178
      %v1180 = vpop.f32.mrb[0].mxu0
      %v1181 = vpop.f32.mrb[0].mxu0
      %v1182 = vadd.f32 %v965, %v1181
      %v1183 = vpop.f32.mrb[0].mxu0
      %1184 = vmatprep.mubr.bf16.mxu0 0
      %1185 = vmatmul.mubr.bf16.gmra.mrb[0].mxu0 %v1097
      %v1186 = vpop.f32.mrb[0].mxu0
      %v1187 = vadd.f32 %v970, %v1186
      %v1188 = vpop.f32.mrb[0].mxu0
      %v1189 = vpop.f32.mrb[0].mxu0
      %v1190 = vadd.f32 %v973, %v1189
      %v1191 = vpop.f32.mrb[0].mxu0
      %1192 = vmatprep.mubr.bf16.mxu0 0
      %1193 = vmatmul.mubr.bf16.gmra.mrb[0].mxu0 %v1100
      %v1194 = vpop.f32.mrb[0].mxu0
      %v1195 = vadd.f32 %v978, %v1194
      %v1196 = vpop.f32.mrb[0].mxu0
      %v1197 = vpop.f32.mrb[0].mxu0
      %v1198 = vadd.f32 %v981, %v1197
      %v1199 = vpop.f32.mrb[0].mxu0
      %1200 = vmatprep.mubr.bf16.mxu0 0
      %1201 = vmatmul.mubr.bf16.gmra.mrb[0].mxu0 %v1103
      %v1202 = vpop.f32.mrb[0].mxu0
      %v1203 = vadd.f32 %v986, %v1202
      %v1204 = vpop.f32.mrb[0].mxu0
      %v1205 = vpop.f32.mrb[0].mxu0
      %v1206 = vadd.f32 %v989, %v1205
      %v1207 = vpop.f32.mrb[0].mxu0
      %1208 = vmatprep.mubr.bf16.mxu0 0
      %1209 = vmatmul.mubr.bf16.gmra.mrb[0].mxu0 %v1106
      %v1210 = vpop.f32.mrb[0].mxu0
      %v1211 = vadd.f32 %v994, %v1210
      %v1212 = vpop.f32.mrb[0].mxu0
      %v1213 = vpop.f32.mrb[0].mxu0
      %v1214 = vadd.f32 %v997, %v1213
      %v1215 = vpop.f32.mrb[0].mxu0
      %1216 = vmatprep.mubr.bf16.mxu0 0
      %1217 = vmatmul.mubr.bf16.gmra.mrb[0].mxu0 %v1109
      %v1218 = vpop.f32.mrb[0].mxu0
      %v1219 = vadd.f32 %v1002, %v1218
      %v1220 = vpop.f32.mrb[0].mxu0
      %v1221 = vpop.f32.mrb[0].mxu0
      %v1222 = vadd.f32 %v1005, %v1221
      %v1223 = vpop.f32.mrb[0].mxu0
      %1224 = vmatprep.mubr.bf16.mxu0 0
      %1225 = vmatmul.mubr.bf16.gmra.mrb[0].mxu0 %v1112
      %v1226 = vpop.f32.mrb[0].mxu0
      %v1227 = vadd.f32 %v1010, %v1226
      %v1228 = vpop.f32.mrb[0].mxu0
      %v1229 = vpop.f32.mrb[0].mxu0
      %v1230 = vadd.f32 %v1013, %v1229
      %v1231 = vpop.f32.mrb[0].mxu0
      %1232 = vmatprep.mubr.bf16.mxu0 0
      %1233 = vmatmul.mubr.bf16.gmra.mrb[0].mxu0 %v1115
      %v1234 = vpop.f32.mrb[0].mxu0
      %v1235 = vadd.f32 %v1018, %v1234
      %v1236 = vpop.f32.mrb[0].mxu0
      %v1237 = vpop.f32.mrb[0].mxu0
      %v1238 = vadd.f32 %v1021, %v1237
      %v1239 = vpop.f32.mrb[0].mxu0
      %1240 = vmatprep.mubr.bf16.mxu0 0
      %1241 = vmatmul.mubr.bf16.gmra.mrb[0].mxu0 %v1118
      %v1242 = vpop.f32.mrb[0].mxu0
      %v1243 = vadd.f32 %v1026, %v1242
      %v1244 = vpop.f32.mrb[0].mxu0
      %v1245 = vpop.f32.mrb[0].mxu0
      %v1246 = vadd.f32 %v1029, %v1245
      %v1247 = vpop.f32.mrb[0].mxu0
      %1248 = vmatprep.mubr.bf16.mxu0 0
      %1249 = vmatmul.mubr.bf16.gmra.mrb[0].mxu0 %v1121
      %v1250 = vpop.f32.mrb[0].mxu0
      %v1251 = vadd.f32 %v1034, %v1250
      %v1252 = vpop.f32.mrb[0].mxu0
      %v1253 = vpop.f32.mrb[0].mxu0
      %v1254 = vadd.f32 %v1037, %v1253
      %v1255 = vpop.f32.mrb[0].mxu0
      %1256 = vmatprep.mubr.bf16.mxu0 0
      %1257 = vmatmul.mubr.bf16.gmra.mrb[0].mxu0 %v1124
      %v1258 = vpop.f32.mrb[0].mxu0
      %v1259 = vadd.f32 %v1042, %v1258
      %v1260 = vpop.f32.mrb[0].mxu0
      %v1261 = vpop.f32.mrb[0].mxu0
      %v1262 = vadd.f32 %v1045, %v1261
      %v1263 = vpop.f32.mrb[0].mxu0
      %1264 = vmatprep.mubr.bf16.mxu0 0
      %1265 = vmatmul.mubr.bf16.gmra.mrb[0].mxu0 %v1127
      %v1266 = vpop.f32.mrb[0].mxu0
      %v1267 = vadd.f32 %v1050, %v1266
      %v1268 = vpop.f32.mrb[0].mxu0
      %v1269 = vpop.f32.mrb[0].mxu0
      %v1270 = vadd.f32 %v1053, %v1269
      %v1271 = vpop.f32.mrb[0].mxu0
      %1272 = vmatprep.mubr.bf16.mxu0 0
      %1273 = vmatmul.mubr.bf16.gmra.mrb[0].mxu0 %v1130
      %v1274 = vpop.f32.mrb[0].mxu0
      %v1275 = vadd.f32 %v1058, %v1274
      %v1276 = vpop.f32.mrb[0].mxu0
      %v1277 = vpop.f32.mrb[0].mxu0
      %v1278 = vadd.f32 %v1061, %v1277
      %v1279 = vpop.f32.mrb[0].mxu0
      %1280 = vmatprep.mubr.bf16.mxu0 0
      %1281 = vmatmul.mubr.bf16.gmra.mrb[0].mxu0 %v1133
      %v1282 = vpop.f32.mrb[0].mxu0
      %v1283 = vadd.f32 %v1066, %v1282
      %v1284 = vpop.f32.mrb[0].mxu0
      %v1285 = vpop.f32.mrb[0].mxu0
      %v1286 = vadd.f32 %v1069, %v1285
      %v1287 = vpop.f32.mrb[0].mxu0
      %1288 = vmatprep.mubr.bf16.mxu0 0
      %1289 = vmatmul.mubr.bf16.gmra.mrb[0].mxu0 %v1136
      %v1290 = vpop.f32.mrb[0].mxu0
      %v1291 = vadd.f32 %v1074, %v1290
      %v1292 = vpop.f32.mrb[0].mxu0
      %v1293 = vpop.f32.mrb[0].mxu0
      %v1294 = vadd.f32 %v1077, %v1293
      %v1295 = vpop.f32.mrb[0].mxu0
      %1296 = vmatprep.mubr.bf16.mxu0 0
      %1297 = vmatmul.mubr.bf16.gmra.mrb[0].mxu0 %v1139
      %v1298 = vpop.f32.mrb[0].mxu0
      %v1299 = vadd.f32 %v1082, %v1298
      %v1300 = vpop.f32.mrb[0].mxu0
      %v1301 = vpop.f32.mrb[0].mxu0
      %v1302 = vadd.f32 %v1085, %v1301
      %v1303 = vpop.f32.mrb[0].mxu0
      %1304 = vdwg.mxu0
      %s1305 = scalar_lea.vmem [#allocation2], 16
      %v1306 = vld [vmem:[%s1305] sm:$0xff]
      %v1307 = vld [vmem:[%s1305 + $0x8] sm:$0xff]
      %v1308 = vld [vmem:[%s1305 + $0x10] sm:$0xff]
      %v1309 = vld [vmem:[%s1305 + $0x18] sm:$0xff]
      %v1310 = vld [vmem:[%s1305 + $0x20] sm:$0xff]
      %v1311 = vld [vmem:[%s1305 + $0x28] sm:$0xff]
      %v1312 = vld [vmem:[%s1305 + $0x30] sm:$0xff]
      %v1313 = vld [vmem:[%s1305 + $0x38] sm:$0xff]
      %v1314 = vld [vmem:[%s1305 + $0x40] sm:$0xff]
      %v1315 = vld [vmem:[%s1305 + $0x48] sm:$0xff]
      %v1316 = vld [vmem:[%s1305 + $0x50] sm:$0xff]
      %v1317 = vld [vmem:[%s1305 + $0x58] sm:$0xff]
      %v1318 = vld [vmem:[%s1305 + $0x60] sm:$0xff]
      %v1319 = vld [vmem:[%s1305 + $0x68] sm:$0xff]
      %v1320 = vld [vmem:[%s1305 + $0x70] sm:$0xff]
      %v1321 = vld [vmem:[%s1305 + $0x78] sm:$0xff]
      %s1322 = scalar_lea.vmem %s1, 16
      %v1323 = vld [vmem:[%s1322] sm:$0xf]
      %v1324 = vld [vmem:[%s1322 + $0x4] sm:$0x3]
      %v1327 = vunpack.c.l.b16 %v1323
      %v1328 = vunpack.c.l.b16 %v1324
      %v1329 = vpack.c.b16 %v1328, %v1327
      %v1331 = vsel %vm796, %v1306, 0
      %v1334 = vsel %vm796, %v1307, 0
      %v1337 = vsel %vm796, %v1308, 0
      %v1340 = vsel %vm796, %v1309, 0
      %v1343 = vsel %vm796, %v1310, 0
      %v1346 = vsel %vm796, %v1311, 0
      %v1349 = vsel %vm796, %v1312, 0
      %v1352 = vsel %vm796, %v1313, 0
      %v1355 = vsel %vm796, %v1314, 0
      %v1358 = vsel %vm796, %v1315, 0
      %v1361 = vsel %vm796, %v1316, 0
      %v1364 = vsel %vm796, %v1317, 0
      %v1367 = vsel %vm796, %v1318, 0
      %v1370 = vsel %vm796, %v1319, 0
      %v1373 = vsel %vm796, %v1320, 0
      %v1376 = vsel %vm796, %v1321, 0
      %v1379 = vsel %vm923, %v1329, 0
      %1381 = vmatprep.subr.bf16.mxu0 0
      %1382 = vmatpush1.bf16.msra.mxu0 %v1379
      %1383 = vmatprep.subr.bf16.mxu0 0
      %1384 = vmatpush1.bf16.msra.mxu0 0
      %1385 = vmatprep.subr.bf16.mxu0 0
      %1386 = vmatpush1.bf16.msra.mxu0 0
      %1387 = vmatprep.subr.bf16.mxu0 0
      %1388 = vmatpush1.bf16.msra.mxu0 0
      %1389 = vmatprep.subr.bf16.mxu0 0
      %1390 = vmatpush1.bf16.msra.mxu0 0
      %1391 = vmatprep.subr.bf16.mxu0 0
      %1392 = vmatpush1.bf16.msra.mxu0 0
      %1393 = vmatprep.subr.bf16.mxu0 0
      %1394 = vmatpush1.bf16.msra.mxu0 0
      %1395 = vmatprep.subr.bf16.mxu0 0
      %1396 = vmatpush1.bf16.msra.mxu0 0
      %1397 = vmatprep.subr.bf16.mxu0 0
      %1398 = vmatpush1.bf16.msra.mxu0 0
      %1399 = vmatprep.subr.bf16.mxu0 0
      %1400 = vmatpush1.bf16.msra.mxu0 0
      %1401 = vmatprep.subr.bf16.mxu0 0
      %1402 = vmatpush1.bf16.msra.mxu0 0
      %1403 = vmatprep.subr.bf16.mxu0 0
      %1404 = vmatpush1.bf16.msra.mxu0 0
      %1405 = vmatprep.subr.bf16.mxu0 0
      %1406 = vmatpush1.bf16.msra.mxu0 0
      %1407 = vmatprep.subr.bf16.mxu0 0
      %1408 = vmatpush1.bf16.msra.mxu0 0
      %1409 = vmatprep.subr.bf16.mxu0 0
      %1410 = vmatpush1.bf16.msra.mxu0 0
      %1411 = vmatprep.subr.bf16.mxu0 0
      %1412 = vmatpush1.bf16.msra.mxu0 0
      %1413 = vmatprep.mubr.bf16.mxu0 0
      %1414 = vmatmul.mubr.bf16.gmra.mrb[0].mxu0 %v1331
      %v1415 = vpop.f32.mrb[0].mxu0
      %v1416 = vadd.f32 0.0, %v1415
      %v1417 = vpop.f32.mrb[0].mxu0
      %v1418 = vpop.f32.mrb[0].mxu0
      %v1419 = vadd.f32 0.0, %v1418
      %v1420 = vpop.f32.mrb[0].mxu0
      %1421 = vmatprep.mubr.bf16.mxu0 0
      %1422 = vmatmul.mubr.bf16.gmra.mrb[0].mxu0 %v1334
      %v1423 = vpop.f32.mrb[0].mxu0
      %v1424 = vadd.f32 0.0, %v1423
      %v1425 = vpop.f32.mrb[0].mxu0
      %v1426 = vpop.f32.mrb[0].mxu0
      %v1427 = vadd.f32 0.0, %v1426
      %v1428 = vpop.f32.mrb[0].mxu0
      %1429 = vmatprep.mubr.bf16.mxu0 0
      %1430 = vmatmul.mubr.bf16.gmra.mrb[0].mxu0 %v1337
      %v1431 = vpop.f32.mrb[0].mxu0
      %v1432 = vadd.f32 0.0, %v1431
      %v1433 = vpop.f32.mrb[0].mxu0
      %v1434 = vpop.f32.mrb[0].mxu0
      %v1435 = vadd.f32 0.0, %v1434
      %v1436 = vpop.f32.mrb[0].mxu0
      %1437 = vmatprep.mubr.bf16.mxu0 0
      %1438 = vmatmul.mubr.bf16.gmra.mrb[0].mxu0 %v1340
      %v1439 = vpop.f32.mrb[0].mxu0
      %v1440 = vadd.f32 0.0, %v1439
      %v1441 = vpop.f32.mrb[0].mxu0
      %v1442 = vpop.f32.mrb[0].mxu0
      %v1443 = vadd.f32 0.0, %v1442
      %v1444 = vpop.f32.mrb[0].mxu0
      %1445 = vmatprep.mubr.bf16.mxu0 0
      %1446 = vmatmul.mubr.bf16.gmra.mrb[0].mxu0 %v1343
      %v1447 = vpop.f32.mrb[0].mxu0
      %v1448 = vadd.f32 0.0, %v1447
      %v1449 = vpop.f32.mrb[0].mxu0
      %v1450 = vpop.f32.mrb[0].mxu0
      %v1451 = vadd.f32 0.0, %v1450
      %v1452 = vpop.f32.mrb[0].mxu0
      %1453 = vmatprep.mubr.bf16.mxu0 0
      %1454 = vmatmul.mubr.bf16.gmra.mrb[0].mxu0 %v1346
      %v1455 = vpop.f32.mrb[0].mxu0
      %v1456 = vadd.f32 0.0, %v1455
      %v1457 = vpop.f32.mrb[0].mxu0
      %v1458 = vpop.f32.mrb[0].mxu0
      %v1459 = vadd.f32 0.0, %v1458
      %v1460 = vpop.f32.mrb[0].mxu0
      %1461 = vmatprep.mubr.bf16.mxu0 0
      %1462 = vmatmul.mubr.bf16.gmra.mrb[0].mxu0 %v1349
      %v1463 = vpop.f32.mrb[0].mxu0
      %v1464 = vadd.f32 0.0, %v1463
      %v1465 = vpop.f32.mrb[0].mxu0
      %v1466 = vpop.f32.mrb[0].mxu0
      %v1467 = vadd.f32 0.0, %v1466
      %v1468 = vpop.f32.mrb[0].mxu0
      %1469 = vmatprep.mubr.bf16.mxu0 0
      %1470 = vmatmul.mubr.bf16.gmra.mrb[0].mxu0 %v1352
      %v1471 = vpop.f32.mrb[0].mxu0
      %v1472 = vadd.f32 0.0, %v1471
      %v1473 = vpop.f32.mrb[0].mxu0
      %v1474 = vpop.f32.mrb[0].mxu0
      %v1475 = vadd.f32 0.0, %v1474
      %v1476 = vpop.f32.mrb[0].mxu0
      %1477 = vmatprep.mubr.bf16.mxu0 0
      %1478 = vmatmul.mubr.bf16.gmra.mrb[0].mxu0 %v1355
      %v1479 = vpop.f32.mrb[0].mxu0
      %v1480 = vadd.f32 0.0, %v1479
      %v1481 = vpop.f32.mrb[0].mxu0
      %v1482 = vpop.f32.mrb[0].mxu0
      %v1483 = vadd.f32 0.0, %v1482
      %v1484 = vpop.f32.mrb[0].mxu0
      %1485 = vmatprep.mubr.bf16.mxu0 0
      %1486 = vmatmul.mubr.bf16.gmra.mrb[0].mxu0 %v1358
      %v1487 = vpop.f32.mrb[0].mxu0
      %v1488 = vadd.f32 0.0, %v1487
      %v1489 = vpop.f32.mrb[0].mxu0
      %v1490 = vpop.f32.mrb[0].mxu0
      %v1491 = vadd.f32 0.0, %v1490
      %v1492 = vpop.f32.mrb[0].mxu0
      %1493 = vmatprep.mubr.bf16.mxu0 0
      %1494 = vmatmul.mubr.bf16.gmra.mrb[0].mxu0 %v1361
      %v1495 = vpop.f32.mrb[0].mxu0
      %v1496 = vadd.f32 0.0, %v1495
      %v1497 = vpop.f32.mrb[0].mxu0
      %v1498 = vpop.f32.mrb[0].mxu0
      %v1499 = vadd.f32 0.0, %v1498
      %v1500 = vpop.f32.mrb[0].mxu0
      %1501 = vmatprep.mubr.bf16.mxu0 0
      %1502 = vmatmul.mubr.bf16.gmra.mrb[0].mxu0 %v1364
      %v1503 = vpop.f32.mrb[0].mxu0
      %v1504 = vadd.f32 0.0, %v1503
      %v1505 = vpop.f32.mrb[0].mxu0
      %v1506 = vpop.f32.mrb[0].mxu0
      %v1507 = vadd.f32 0.0, %v1506
      %v1508 = vpop.f32.mrb[0].mxu0
      %1509 = vmatprep.mubr.bf16.mxu0 0
      %1510 = vmatmul.mubr.bf16.gmra.mrb[0].mxu0 %v1367
      %v1511 = vpop.f32.mrb[0].mxu0
      %v1512 = vadd.f32 0.0, %v1511
      %v1513 = vpop.f32.mrb[0].mxu0
      %v1514 = vpop.f32.mrb[0].mxu0
      %v1515 = vadd.f32 0.0, %v1514
      %v1516 = vpop.f32.mrb[0].mxu0
      %1517 = vmatprep.mubr.bf16.mxu0 0
      %1518 = vmatmul.mubr.bf16.gmra.mrb[0].mxu0 %v1370
      %v1519 = vpop.f32.mrb[0].mxu0
      %v1520 = vadd.f32 0.0, %v1519
      %v1521 = vpop.f32.mrb[0].mxu0
      %v1522 = vpop.f32.mrb[0].mxu0
      %v1523 = vadd.f32 0.0, %v1522
      %v1524 = vpop.f32.mrb[0].mxu0
      %1525 = vmatprep.mubr.bf16.mxu0 0
      %1526 = vmatmul.mubr.bf16.gmra.mrb[0].mxu0 %v1373
      %v1527 = vpop.f32.mrb[0].mxu0
      %v1528 = vadd.f32 0.0, %v1527
      %v1529 = vpop.f32.mrb[0].mxu0
      %v1530 = vpop.f32.mrb[0].mxu0
      %v1531 = vadd.f32 0.0, %v1530
      %v1532 = vpop.f32.mrb[0].mxu0
      %1533 = vmatprep.mubr.bf16.mxu0 0
      %1534 = vmatmul.mubr.bf16.gmra.mrb[0].mxu0 %v1376
      %v1535 = vpop.f32.mrb[0].mxu0
      %v1536 = vadd.f32 0.0, %v1535
      %v1537 = vpop.f32.mrb[0].mxu0
      %v1538 = vpop.f32.mrb[0].mxu0
      %v1539 = vadd.f32 0.0, %v1538
      %v1540 = vpop.f32.mrb[0].mxu0
      %1541 = vdwg.mxu0
      %v1542 = vadd.f32 %v1179, %v1416
      %v1543 = vadd.f32 %v1182, %v1419
      %v1544 = vadd.f32 %v1187, %v1424
      %v1545 = vadd.f32 %v1190, %v1427
      %v1546 = vadd.f32 %v1195, %v1432
      %v1547 = vadd.f32 %v1198, %v1435
      %v1548 = vadd.f32 %v1203, %v1440
      %v1549 = vadd.f32 %v1206, %v1443
      %v1550 = vadd.f32 %v1211, %v1448
      %v1551 = vadd.f32 %v1214, %v1451
      %v1552 = vadd.f32 %v1219, %v1456
      %v1553 = vadd.f32 %v1222, %v1459
      %v1554 = vadd.f32 %v1227, %v1464
      %v1555 = vadd.f32 %v1230, %v1467
      %v1556 = vadd.f32 %v1235, %v1472
      %v1557 = vadd.f32 %v1238, %v1475
      %v1558 = vadd.f32 %v1243, %v1480
      %v1559 = vadd.f32 %v1246, %v1483
      %v1560 = vadd.f32 %v1251, %v1488
      %v1561 = vadd.f32 %v1254, %v1491
      %v1562 = vadd.f32 %v1259, %v1496
      %v1563 = vadd.f32 %v1262, %v1499
      %v1564 = vadd.f32 %v1267, %v1504
      %v1565 = vadd.f32 %v1270, %v1507
      %v1566 = vadd.f32 %v1275, %v1512
      %v1567 = vadd.f32 %v1278, %v1515
      %v1568 = vadd.f32 %v1283, %v1520
      %v1569 = vadd.f32 %v1286, %v1523
      %v1570 = vadd.f32 %v1291, %v1528
      %v1571 = vadd.f32 %v1294, %v1531
      %v1572 = vadd.f32 %v1299, %v1536
      %v1573 = vadd.f32 %v1302, %v1539
      %v1574 = vld [vmem:[%s2] sm:$0x1]
      %v1576 = vlaneseq
      %v1577 = vshrl.u32 %v1576, 7
      %v1578 = vsub.s32 0, %v1577
      %v1579 = vrot.slane %v1574, %v1578
      %v1581 = vmul.f32 %v1542, %v1579
      %v1582 = vmul.f32 %v1543, %v1579
      %v1583 = vmul.f32 %v1544, %v1579
      %v1584 = vmul.f32 %v1545, %v1579
      %v1585 = vmul.f32 %v1546, %v1579
      %v1586 = vmul.f32 %v1547, %v1579
      %v1587 = vmul.f32 %v1548, %v1579
      %v1588 = vmul.f32 %v1549, %v1579
      %v1589 = vmul.f32 %v1550, %v1579
      %v1590 = vmul.f32 %v1551, %v1579
      %v1591 = vmul.f32 %v1552, %v1579
      %v1592 = vmul.f32 %v1553, %v1579
      %v1593 = vmul.f32 %v1554, %v1579
      %v1594 = vmul.f32 %v1555, %v1579
      %v1595 = vmul.f32 %v1556, %v1579
      %v1596 = vmul.f32 %v1557, %v1579
      %v1597 = vmul.f32 %v1558, %v1579
      %v1598 = vmul.f32 %v1559, %v1579
      %v1599 = vmul.f32 %v1560, %v1579
      %v1600 = vmul.f32 %v1561, %v1579
      %v1601 = vmul.f32 %v1562, %v1579
      %v1602 = vmul.f32 %v1563, %v1579
      %v1603 = vmul.f32 %v1564, %v1579
      %v1604 = vmul.f32 %v1565, %v1579
      %v1605 = vmul.f32 %v1566, %v1579
      %v1606 = vmul.f32 %v1567, %v1579
      %v1607 = vmul.f32 %v1568, %v1579
      %v1608 = vmul.f32 %v1569, %v1579
      %v1609 = vmul.f32 %v1570, %v1579
      %v1610 = vmul.f32 %v1571, %v1579
      %v1611 = vmul.f32 %v1572, %v1579
      %v1612 = vmul.f32 %v1573, %v1579
      %v1613 = vld [vmem:[%s3] sm:$0x1]
      %v1615 = vlaneseq
      %v1616 = vshrl.u32 %v1615, 7
      %v1617 = vsub.s32 0, %v1616
      %v1618 = vrot.slane %v1613, %v1617
      %v1620 = vadd.f32 %v1581, %v1618
      %v1621 = vadd.f32 %v1582, %v1618
      %v1622 = vadd.f32 %v1583, %v1618
      %v1623 = vadd.f32 %v1584, %v1618
      %v1624 = vadd.f32 %v1585, %v1618
      %v1625 = vadd.f32 %v1586, %v1618
      %v1626 = vadd.f32 %v1587, %v1618
      %v1627 = vadd.f32 %v1588, %v1618
      %v1628 = vadd.f32 %v1589, %v1618
      %v1629 = vadd.f32 %v1590, %v1618
      %v1630 = vadd.f32 %v1591, %v1618
      %v1631 = vadd.f32 %v1592, %v1618
      %v1632 = vadd.f32 %v1593, %v1618
      %v1633 = vadd.f32 %v1594, %v1618
      %v1634 = vadd.f32 %v1595, %v1618
      %v1635 = vadd.f32 %v1596, %v1618
      %v1636 = vadd.f32 %v1597, %v1618
      %v1637 = vadd.f32 %v1598, %v1618
      %v1638 = vadd.f32 %v1599, %v1618
      %v1639 = vadd.f32 %v1600, %v1618
      %v1640 = vadd.f32 %v1601, %v1618
      %v1641 = vadd.f32 %v1602, %v1618
      %v1642 = vadd.f32 %v1603, %v1618
      %v1643 = vadd.f32 %v1604, %v1618
      %v1644 = vadd.f32 %v1605, %v1618
      %v1645 = vadd.f32 %v1606, %v1618
      %v1646 = vadd.f32 %v1607, %v1618
      %v1647 = vadd.f32 %v1608, %v1618
      %v1648 = vadd.f32 %v1609, %v1618
      %v1649 = vadd.f32 %v1610, %v1618
      %v1650 = vadd.f32 %v1611, %v1618
      %v1651 = vadd.f32 %v1612, %v1618
      %v1652 = vmax.f32 %v1620, 0.0
      %v1653 = vmax.f32 %v1621, 0.0
      %v1654 = vmax.f32 %v1622, 0.0
      %v1655 = vmax.f32 %v1623, 0.0
      %v1656 = vmax.f32 %v1624, 0.0
      %v1657 = vmax.f32 %v1625, 0.0
      %v1658 = vmax.f32 %v1626, 0.0
      %v1659 = vmax.f32 %v1627, 0.0
      %v1660 = vmax.f32 %v1628, 0.0
      %v1661 = vmax.f32 %v1629, 0.0
      %v1662 = vmax.f32 %v1630, 0.0
      %v1663 = vmax.f32 %v1631, 0.0
      %v1664 = vmax.f32 %v1632, 0.0
      %v1665 = vmax.f32 %v1633, 0.0
      %v1666 = vmax.f32 %v1634, 0.0
      %v1667 = vmax.f32 %v1635, 0.0
      %v1668 = vmax.f32 %v1636, 0.0
      %v1669 = vmax.f32 %v1637, 0.0
      %v1670 = vmax.f32 %v1638, 0.0
      %v1671 = vmax.f32 %v1639, 0.0
      %v1672 = vmax.f32 %v1640, 0.0
      %v1673 = vmax.f32 %v1641, 0.0
      %v1674 = vmax.f32 %v1642, 0.0
      %v1675 = vmax.f32 %v1643, 0.0
      %v1676 = vmax.f32 %v1644, 0.0
      %v1677 = vmax.f32 %v1645, 0.0
      %v1678 = vmax.f32 %v1646, 0.0
      %v1679 = vmax.f32 %v1647, 0.0
      %v1680 = vmax.f32 %v1648, 0.0
      %v1681 = vmax.f32 %v1649, 0.0
      %v1682 = vmax.f32 %v1650, 0.0
      %v1683 = vmax.f32 %v1651, 0.0
      %v1716 = vrot.slane %v1652, 7
      %v1717 = vrot.slane %v1653, 7
      %v1718 = vsel %vm344, %v1716, %v1717
      %v1719 = vrot.slane %v1654, 7
      %v1720 = vrot.slane %v1655, 7
      %v1721 = vsel %vm344, %v1719, %v1720
      %v1722 = vrot.slane %v1656, 7
      %v1723 = vrot.slane %v1657, 7
      %v1724 = vsel %vm344, %v1722, %v1723
      %v1725 = vrot.slane %v1658, 7
      %v1726 = vrot.slane %v1659, 7
      %v1727 = vsel %vm344, %v1725, %v1726
      %v1728 = vrot.slane %v1660, 7
      %v1729 = vrot.slane %v1661, 7
      %v1730 = vsel %vm344, %v1728, %v1729
      %v1731 = vrot.slane %v1662, 7
      %v1732 = vrot.slane %v1663, 7
      %v1733 = vsel %vm344, %v1731, %v1732
      %v1734 = vrot.slane %v1664, 7
      %v1735 = vrot.slane %v1665, 7
      %v1736 = vsel %vm344, %v1734, %v1735
      %v1737 = vrot.slane %v1666, 7
      %v1738 = vrot.slane %v1667, 7
      %v1739 = vsel %vm344, %v1737, %v1738
      %v1740 = vrot.slane %v1668, 7
      %v1741 = vrot.slane %v1669, 7
      %v1742 = vsel %vm344, %v1740, %v1741
      %v1743 = vrot.slane %v1670, 7
      %v1744 = vrot.slane %v1671, 7
      %v1745 = vsel %vm344, %v1743, %v1744
      %v1746 = vrot.slane %v1672, 7
      %v1747 = vrot.slane %v1673, 7
      %v1748 = vsel %vm344, %v1746, %v1747
      %v1749 = vrot.slane %v1674, 7
      %v1750 = vrot.slane %v1675, 7
      %v1751 = vsel %vm344, %v1749, %v1750
      %v1752 = vrot.slane %v1676, 7
      %v1753 = vrot.slane %v1677, 7
      %v1754 = vsel %vm344, %v1752, %v1753
      %v1755 = vrot.slane %v1678, 7
      %v1756 = vrot.slane %v1679, 7
      %v1757 = vsel %vm344, %v1755, %v1756
      %v1758 = vrot.slane %v1680, 7
      %v1759 = vrot.slane %v1681, 7
      %v1760 = vsel %vm344, %v1758, %v1759
      %v1761 = vrot.slane %v1682, 7
      %v1762 = vrot.slane %v1683, 7
      %v1763 = vsel %vm344, %v1761, %v1762
      %v1796 = vsel %vm344, 0.0, %v1716
      %v1797 = vsel %vm344, 0.0, %v1719
      %v1798 = vsel %vm344, 0.0, %v1722
      %v1799 = vsel %vm344, 0.0, %v1725
      %v1800 = vsel %vm344, 0.0, %v1728
      %v1801 = vsel %vm344, 0.0, %v1731
      %v1802 = vsel %vm344, 0.0, %v1734
      %v1803 = vsel %vm344, 0.0, %v1737
      %v1804 = vsel %vm344, 0.0, %v1740
      %v1805 = vsel %vm344, 0.0, %v1743
      %v1806 = vsel %vm344, 0.0, %v1746
      %v1807 = vsel %vm344, 0.0, %v1749
      %v1808 = vsel %vm344, 0.0, %v1752
      %v1809 = vsel %vm344, 0.0, %v1755
      %v1810 = vsel %vm344, 0.0, %v1758
      %v1811 = vsel %vm344, 0.0, %v1761
      %v1812 = vrot.slane %v1652, 1
      %v1813 = vrot.slane %v1653, 1
      %v1814 = vsel %vm441, %v1812, %v1813
      %v1815 = vrot.slane %v1654, 1
      %v1816 = vrot.slane %v1655, 1
      %v1817 = vsel %vm441, %v1815, %v1816
      %v1818 = vrot.slane %v1656, 1
      %v1819 = vrot.slane %v1657, 1
      %v1820 = vsel %vm441, %v1818, %v1819
      %v1821 = vrot.slane %v1658, 1
      %v1822 = vrot.slane %v1659, 1
      %v1823 = vsel %vm441, %v1821, %v1822
      %v1824 = vrot.slane %v1660, 1
      %v1825 = vrot.slane %v1661, 1
      %v1826 = vsel %vm441, %v1824, %v1825
      %v1827 = vrot.slane %v1662, 1
      %v1828 = vrot.slane %v1663, 1
      %v1829 = vsel %vm441, %v1827, %v1828
      %v1830 = vrot.slane %v1664, 1
      %v1831 = vrot.slane %v1665, 1
      %v1832 = vsel %vm441, %v1830, %v1831
      %v1833 = vrot.slane %v1666, 1
      %v1834 = vrot.slane %v1667, 1
      %v1835 = vsel %vm441, %v1833, %v1834
      %v1836 = vrot.slane %v1668, 1
      %v1837 = vrot.slane %v1669, 1
      %v1838 = vsel %vm441, %v1836, %v1837
      %v1839 = vrot.slane %v1670, 1
      %v1840 = vrot.slane %v1671, 1
      %v1841 = vsel %vm441, %v1839, %v1840
      %v1842 = vrot.slane %v1672, 1
      %v1843 = vrot.slane %v1673, 1
      %v1844 = vsel %vm441, %v1842, %v1843
      %v1845 = vrot.slane %v1674, 1
      %v1846 = vrot.slane %v1675, 1
      %v1847 = vsel %vm441, %v1845, %v1846
      %v1848 = vrot.slane %v1676, 1
      %v1849 = vrot.slane %v1677, 1
      %v1850 = vsel %vm441, %v1848, %v1849
      %v1851 = vrot.slane %v1678, 1
      %v1852 = vrot.slane %v1679, 1
      %v1853 = vsel %vm441, %v1851, %v1852
      %v1854 = vrot.slane %v1680, 1
      %v1855 = vrot.slane %v1681, 1
      %v1856 = vsel %vm441, %v1854, %v1855
      %v1857 = vrot.slane %v1682, 1
      %v1858 = vrot.slane %v1683, 1
      %v1859 = vsel %vm441, %v1857, %v1858
      %v1876 = vsel %vm441, %v1813, 0.0
      %v1877 = vsel %vm441, %v1816, 0.0
      %v1878 = vsel %vm441, %v1819, 0.0
      %v1879 = vsel %vm441, %v1822, 0.0
      %v1880 = vsel %vm441, %v1825, 0.0
      %v1881 = vsel %vm441, %v1828, 0.0
      %v1882 = vsel %vm441, %v1831, 0.0
      %v1883 = vsel %vm441, %v1834, 0.0
      %v1884 = vsel %vm441, %v1837, 0.0
      %v1885 = vsel %vm441, %v1840, 0.0
      %v1886 = vsel %vm441, %v1843, 0.0
      %v1887 = vsel %vm441, %v1846, 0.0
      %v1888 = vsel %vm441, %v1849, 0.0
      %v1889 = vsel %vm441, %v1852, 0.0
      %v1890 = vsel %vm441, %v1855, 0.0
      %v1891 = vsel %vm441, %v1858, 0.0
      %1892 = vrot.lane.b32.xlu0 %v1652, 4
      %v1893 = vpop.permute.xlu0 %1892
      %1894 = vrot.lane.b32.xlu0 %v1653, 4
      %v1895 = vpop.permute.xlu0 %1894
      %1896 = vrot.lane.b32.xlu0 %v1654, 4
      %v1897 = vpop.permute.xlu0 %1896
      %1898 = vrot.lane.b32.xlu0 %v1655, 4
      %v1899 = vpop.permute.xlu0 %1898
      %1900 = vrot.lane.b32.xlu0 %v1656, 4
      %v1901 = vpop.permute.xlu0 %1900
      %1902 = vrot.lane.b32.xlu0 %v1657, 4
      %v1903 = vpop.permute.xlu0 %1902
      %1904 = vrot.lane.b32.xlu0 %v1658, 4
      %v1905 = vpop.permute.xlu0 %1904
      %1906 = vrot.lane.b32.xlu0 %v1659, 4
      %v1907 = vpop.permute.xlu0 %1906
      %1908 = vrot.lane.b32.xlu0 %v1660, 4
      %v1909 = vpop.permute.xlu0 %1908
      %1910 = vrot.lane.b32.xlu0 %v1661, 4
      %v1911 = vpop.permute.xlu0 %1910
      %1912 = vrot.lane.b32.xlu0 %v1662, 4
      %v1913 = vpop.permute.xlu0 %1912
      %1914 = vrot.lane.b32.xlu0 %v1663, 4
      %v1915 = vpop.permute.xlu0 %1914
      %1916 = vrot.lane.b32.xlu0 %v1664, 4
      %v1917 = vpop.permute.xlu0 %1916
      %1918 = vrot.lane.b32.xlu0 %v1665, 4
      %v1919 = vpop.permute.xlu0 %1918
      %1920 = vrot.lane.b32.xlu0 %v1666, 4
      %v1921 = vpop.permute.xlu0 %1920
      %1922 = vrot.lane.b32.xlu0 %v1667, 4
      %v1923 = vpop.permute.xlu0 %1922
      %1924 = vrot.lane.b32.xlu0 %v1668, 4
      %v1925 = vpop.permute.xlu0 %1924
      %1926 = vrot.lane.b32.xlu0 %v1669, 4
      %v1927 = vpop.permute.xlu0 %1926
      %1928 = vrot.lane.b32.xlu0 %v1670, 4
      %v1929 = vpop.permute.xlu0 %1928
      %1930 = vrot.lane.b32.xlu0 %v1671, 4
      %v1931 = vpop.permute.xlu0 %1930
      %1932 = vrot.lane.b32.xlu0 %v1672, 4
      %v1933 = vpop.permute.xlu0 %1932
      %1934 = vrot.lane.b32.xlu0 %v1673, 4
      %v1935 = vpop.permute.xlu0 %1934
      %1936 = vrot.lane.b32.xlu0 %v1674, 4
      %v1937 = vpop.permute.xlu0 %1936
      %1938 = vrot.lane.b32.xlu0 %v1675, 4
      %v1939 = vpop.permute.xlu0 %1938
      %1940 = vrot.lane.b32.xlu0 %v1676, 4
      %v1941 = vpop.permute.xlu0 %1940
      %1942 = vrot.lane.b32.xlu0 %v1677, 4
      %v1943 = vpop.permute.xlu0 %1942
      %1944 = vrot.lane.b32.xlu0 %v1678, 4
      %v1945 = vpop.permute.xlu0 %1944
      %1946 = vrot.lane.b32.xlu0 %v1679, 4
      %v1947 = vpop.permute.xlu0 %1946
      %1948 = vrot.lane.b32.xlu0 %v1680, 4
      %v1949 = vpop.permute.xlu0 %1948
      %1950 = vrot.lane.b32.xlu0 %v1681, 4
      %v1951 = vpop.permute.xlu0 %1950
      %1952 = vrot.lane.b32.xlu0 %v1682, 4
      %v1953 = vpop.permute.xlu0 %1952
      %1954 = vrot.lane.b32.xlu0 %v1683, 4
      %v1955 = vpop.permute.xlu0 %1954
      %2004 = vrot.lane.b32.xlu0 %v1814, 8
      %v2005 = vpop.permute.xlu0 %2004
      %2006 = vrot.lane.b32.xlu0 %v1876, 8
      %v2007 = vpop.permute.xlu0 %2006
      %2008 = vrot.lane.b32.xlu0 %v1817, 8
      %v2009 = vpop.permute.xlu0 %2008
      %2010 = vrot.lane.b32.xlu0 %v1877, 8
      %v2011 = vpop.permute.xlu0 %2010
      %2012 = vrot.lane.b32.xlu0 %v1820, 8
      %v2013 = vpop.permute.xlu0 %2012
      %2014 = vrot.lane.b32.xlu0 %v1878, 8
      %v2015 = vpop.permute.xlu0 %2014
      %2016 = vrot.lane.b32.xlu0 %v1823, 8
      %v2017 = vpop.permute.xlu0 %2016
      %2018 = vrot.lane.b32.xlu0 %v1879, 8
      %v2019 = vpop.permute.xlu0 %2018
      %2020 = vrot.lane.b32.xlu0 %v1826, 8
      %v2021 = vpop.permute.xlu0 %2020
      %2022 = vrot.lane.b32.xlu0 %v1880, 8
      %v2023 = vpop.permute.xlu0 %2022
      %2024 = vrot.lane.b32.xlu0 %v1829, 8
      %v2025 = vpop.permute.xlu0 %2024
      %2026 = vrot.lane.b32.xlu0 %v1881, 8
      %v2027 = vpop.permute.xlu0 %2026
      %2028 = vrot.lane.b32.xlu0 %v1832, 8
      %v2029 = vpop.permute.xlu0 %2028
      %2030 = vrot.lane.b32.xlu0 %v1882, 8
      %v2031 = vpop.permute.xlu0 %2030
      %2032 = vrot.lane.b32.xlu0 %v1835, 8
      %v2033 = vpop.permute.xlu0 %2032
      %2034 = vrot.lane.b32.xlu0 %v1883, 8
      %v2035 = vpop.permute.xlu0 %2034
      %2036 = vrot.lane.b32.xlu0 %v1838, 8
      %v2037 = vpop.permute.xlu0 %2036
      %2038 = vrot.lane.b32.xlu0 %v1884, 8
      %v2039 = vpop.permute.xlu0 %2038
      %2040 = vrot.lane.b32.xlu0 %v1841, 8
      %v2041 = vpop.permute.xlu0 %2040
      %2042 = vrot.lane.b32.xlu0 %v1885, 8
      %v2043 = vpop.permute.xlu0 %2042
      %2044 = vrot.lane.b32.xlu0 %v1844, 8
      %v2045 = vpop.permute.xlu0 %2044
      %2046 = vrot.lane.b32.xlu0 %v1886, 8
      %v2047 = vpop.permute.xlu0 %2046
      %2048 = vrot.lane.b32.xlu0 %v1847, 8
      %v2049 = vpop.permute.xlu0 %2048
      %2050 = vrot.lane.b32.xlu0 %v1887, 8
      %v2051 = vpop.permute.xlu0 %2050
      %2052 = vrot.lane.b32.xlu0 %v1850, 8
      %v2053 = vpop.permute.xlu0 %2052
      %2054 = vrot.lane.b32.xlu0 %v1888, 8
      %v2055 = vpop.permute.xlu0 %2054
      %2056 = vrot.lane.b32.xlu0 %v1853, 8
      %v2057 = vpop.permute.xlu0 %2056
      %2058 = vrot.lane.b32.xlu0 %v1889, 8
      %v2059 = vpop.permute.xlu0 %2058
      %2060 = vrot.lane.b32.xlu0 %v1856, 8
      %v2061 = vpop.permute.xlu0 %2060
      %2062 = vrot.lane.b32.xlu0 %v1890, 8
      %v2063 = vpop.permute.xlu0 %2062
      %2064 = vrot.lane.b32.xlu0 %v1859, 8
      %v2065 = vpop.permute.xlu0 %2064
      %2066 = vrot.lane.b32.xlu0 %v1891, 8
      %v2067 = vpop.permute.xlu0 %2066
      %v2100 = vsel %vm730, %v1796, %v1893
      %v2101 = vsel %vm730, %v1718, %v1895
      %v2102 = vsel %vm730, %v1797, %v1897
      %v2103 = vsel %vm730, %v1721, %v1899
      %v2104 = vsel %vm730, %v1798, %v1901
      %v2105 = vsel %vm730, %v1724, %v1903
      %v2106 = vsel %vm730, %v1799, %v1905
      %v2107 = vsel %vm730, %v1727, %v1907
      %v2108 = vsel %vm730, %v1800, %v1909
      %v2109 = vsel %vm730, %v1730, %v1911
      %v2110 = vsel %vm730, %v1801, %v1913
      %v2111 = vsel %vm730, %v1733, %v1915
      %v2112 = vsel %vm730, %v1802, %v1917
      %v2113 = vsel %vm730, %v1736, %v1919
      %v2114 = vsel %vm730, %v1803, %v1921
      %v2115 = vsel %vm730, %v1739, %v1923
      %v2116 = vsel %vm730, %v1804, %v1925
      %v2117 = vsel %vm730, %v1742, %v1927
      %v2118 = vsel %vm730, %v1805, %v1929
      %v2119 = vsel %vm730, %v1745, %v1931
      %v2120 = vsel %vm730, %v1806, %v1933
      %v2121 = vsel %vm730, %v1748, %v1935
      %v2122 = vsel %vm730, %v1807, %v1937
      %v2123 = vsel %vm730, %v1751, %v1939
      %v2124 = vsel %vm730, %v1808, %v1941
      %v2125 = vsel %vm730, %v1754, %v1943
      %v2126 = vsel %vm730, %v1809, %v1945
      %v2127 = vsel %vm730, %v1757, %v1947
      %v2128 = vsel %vm730, %v1810, %v1949
      %v2129 = vsel %vm730, %v1760, %v1951
      %v2130 = vsel %vm730, %v1811, %v1953
      %v2131 = vsel %vm730, %v1763, %v1955
      %v2132 = vsel %vm763, %v2100, %v2005
      %v2133 = vsel %vm763, %v2101, %v2007
      %v2134 = vsel %vm763, %v2102, %v2009
      %v2135 = vsel %vm763, %v2103, %v2011
      %v2136 = vsel %vm763, %v2104, %v2013
      %v2137 = vsel %vm763, %v2105, %v2015
      %v2138 = vsel %vm763, %v2106, %v2017
      %v2139 = vsel %vm763, %v2107, %v2019
      %v2140 = vsel %vm763, %v2108, %v2021
      %v2141 = vsel %vm763, %v2109, %v2023
      %v2142 = vsel %vm763, %v2110, %v2025
      %v2143 = vsel %vm763, %v2111, %v2027
      %v2144 = vsel %vm763, %v2112, %v2029
      %v2145 = vsel %vm763, %v2113, %v2031
      %v2146 = vsel %vm763, %v2114, %v2033
      %v2147 = vsel %vm763, %v2115, %v2035
      %v2148 = vsel %vm763, %v2116, %v2037
      %v2149 = vsel %vm763, %v2117, %v2039
      %v2150 = vsel %vm763, %v2118, %v2041
      %v2151 = vsel %vm763, %v2119, %v2043
      %v2152 = vsel %vm763, %v2120, %v2045
      %v2153 = vsel %vm763, %v2121, %v2047
      %v2154 = vsel %vm763, %v2122, %v2049
      %v2155 = vsel %vm763, %v2123, %v2051
      %v2156 = vsel %vm763, %v2124, %v2053
      %v2157 = vsel %vm763, %v2125, %v2055
      %v2158 = vsel %vm763, %v2126, %v2057
      %v2159 = vsel %vm763, %v2127, %v2059
      %v2160 = vsel %vm763, %v2128, %v2061
      %v2161 = vsel %vm763, %v2129, %v2063
      %v2162 = vsel %vm763, %v2130, %v2065
      %v2163 = vsel %vm763, %v2131, %v2067
      %2164 = vst.msk [vmem:[#allocation3] sm:$0xff] %vm796, 0
      %s2165 = scalar_lea.vmem [#allocation3], 136
      %2166 = vst.msk [vmem:[%s2165] sm:$0xff] %vm796, 0
      %v2167 = vpack.c.bf16 %v2133, %v2132
      %v2168 = vpack.c.bf16 %v2135, %v2134
      %v2169 = vpack.c.bf16 %v2137, %v2136
      %v2170 = vpack.c.bf16 %v2139, %v2138
      %v2171 = vpack.c.bf16 %v2141, %v2140
      %v2172 = vpack.c.bf16 %v2143, %v2142
      %v2173 = vpack.c.bf16 %v2145, %v2144
      %v2174 = vpack.c.bf16 %v2147, %v2146
      %v2175 = vpack.c.bf16 %v2149, %v2148
      %v2176 = vpack.c.bf16 %v2151, %v2150
      %v2177 = vpack.c.bf16 %v2153, %v2152
      %v2178 = vpack.c.bf16 %v2155, %v2154
      %v2179 = vpack.c.bf16 %v2157, %v2156
      %v2180 = vpack.c.bf16 %v2159, %v2158
      %v2181 = vpack.c.bf16 %v2161, %v2160
      %v2182 = vpack.c.bf16 %v2163, %v2162
      %s2183 = scalar_lea.vmem [#allocation3], 8
      %2184 = vst.msk [vmem:[%s2183] sm:$0xff] %vm796, %v2167
      %2185 = vst.msk [vmem:[%s2183 + $0x8] sm:$0xff] %vm796, %v2168
      %2186 = vst.msk [vmem:[%s2183 + $0x10] sm:$0xff] %vm796, %v2169
      %2187 = vst.msk [vmem:[%s2183 + $0x18] sm:$0xff] %vm796, %v2170
      %2188 = vst.msk [vmem:[%s2183 + $0x20] sm:$0xff] %vm796, %v2171
      %2189 = vst.msk [vmem:[%s2183 + $0x28] sm:$0xff] %vm796, %v2172
      %2190 = vst.msk [vmem:[%s2183 + $0x30] sm:$0xff] %vm796, %v2173
      %2191 = vst.msk [vmem:[%s2183 + $0x38] sm:$0xff] %vm796, %v2174
      %2192 = vst.msk [vmem:[%s2183 + $0x40] sm:$0xff] %vm796, %v2175
      %2193 = vst.msk [vmem:[%s2183 + $0x48] sm:$0xff] %vm796, %v2176
      %2194 = vst.msk [vmem:[%s2183 + $0x50] sm:$0xff] %vm796, %v2177
      %2195 = vst.msk [vmem:[%s2183 + $0x58] sm:$0xff] %vm796, %v2178
      %2196 = vst.msk [vmem:[%s2183 + $0x60] sm:$0xff] %vm796, %v2179
      %2197 = vst.msk [vmem:[%s2183 + $0x68] sm:$0xff] %vm796, %v2180
      %2198 = vst.msk [vmem:[%s2183 + $0x70] sm:$0xff] %vm796, %v2181
      %2199 = vst.msk [vmem:[%s2183 + $0x78] sm:$0xff] %vm796, %v2182
      %v2200 = vld [vmem:[#allocation3] sm:$0xff]
      %v2201 = vld [vmem:[#allocation3 + $0x8] sm:$0xff]
      %v2202 = vld [vmem:[#allocation3 + $0x10] sm:$0xff]
      %v2203 = vld [vmem:[#allocation3 + $0x18] sm:$0xff]
      %v2204 = vld [vmem:[#allocation3 + $0x20] sm:$0xff]
      %v2205 = vld [vmem:[#allocation3 + $0x28] sm:$0xff]
      %v2206 = vld [vmem:[#allocation3 + $0x30] sm:$0xff]
      %v2207 = vld [vmem:[#allocation3 + $0x38] sm:$0xff]
      %v2208 = vld [vmem:[#allocation3 + $0x40] sm:$0xff]
      %v2209 = vld [vmem:[#allocation3 + $0x48] sm:$0xff]
      %v2210 = vld [vmem:[#allocation3 + $0x50] sm:$0xff]
      %v2211 = vld [vmem:[#allocation3 + $0x58] sm:$0xff]
      %v2212 = vld [vmem:[#allocation3 + $0x60] sm:$0xff]
      %v2213 = vld [vmem:[#allocation3 + $0x68] sm:$0xff]
      %v2214 = vld [vmem:[#allocation3 + $0x70] sm:$0xff]
      %v2215 = vld [vmem:[#allocation3 + $0x78] sm:$0xff]
      %v2216 = vld [vmem:[%s4] sm:$0xf]
      %v2217 = vld [vmem:[%s4 + $0x4] sm:$0x3]
      %v2218 = vld [vmem:[%s2183] sm:$0xff]
      %v2219 = vld [vmem:[%s2183 + $0x8] sm:$0xff]
      %v2220 = vld [vmem:[%s2183 + $0x10] sm:$0xff]
      %v2221 = vld [vmem:[%s2183 + $0x18] sm:$0xff]
      %v2222 = vld [vmem:[%s2183 + $0x20] sm:$0xff]
      %v2223 = vld [vmem:[%s2183 + $0x28] sm:$0xff]
      %v2224 = vld [vmem:[%s2183 + $0x30] sm:$0xff]
      %v2225 = vld [vmem:[%s2183 + $0x38] sm:$0xff]
      %v2226 = vld [vmem:[%s2183 + $0x40] sm:$0xff]
      %v2227 = vld [vmem:[%s2183 + $0x48] sm:$0xff]
      %v2228 = vld [vmem:[%s2183 + $0x50] sm:$0xff]
      %v2229 = vld [vmem:[%s2183 + $0x58] sm:$0xff]
      %v2230 = vld [vmem:[%s2183 + $0x60] sm:$0xff]
      %v2231 = vld [vmem:[%s2183 + $0x68] sm:$0xff]
      %v2232 = vld [vmem:[%s2183 + $0x70] sm:$0xff]
      %v2233 = vld [vmem:[%s2183 + $0x78] sm:$0xff]
      %s2234 = scalar_lea.vmem %s4, 8
      %v2235 = vld [vmem:[%s2234] sm:$0xf]
      %v2236 = vld [vmem:[%s2234 + $0x4] sm:$0x3]
      %v2239 = vunpack.c.l.b16 %v2235
      %v2240 = vunpack.c.l.b16 %v2236
      %v2241 = vpack.c.b16 %v2240, %v2239
      %v2243 = vsel %vm796, %v2218, 0
      %v2246 = vsel %vm796, %v2219, 0
      %v2249 = vsel %vm796, %v2220, 0
      %v2252 = vsel %vm796, %v2221, 0
      %v2255 = vsel %vm796, %v2222, 0
      %v2258 = vsel %vm796, %v2223, 0
      %v2261 = vsel %vm796, %v2224, 0
      %v2264 = vsel %vm796, %v2225, 0
      %v2267 = vsel %vm796, %v2226, 0
      %v2270 = vsel %vm796, %v2227, 0
      %v2273 = vsel %vm796, %v2228, 0
      %v2276 = vsel %vm796, %v2229, 0
      %v2279 = vsel %vm796, %v2230, 0
      %v2282 = vsel %vm796, %v2231, 0
      %v2285 = vsel %vm796, %v2232, 0
      %v2288 = vsel %vm796, %v2233, 0
      %v2291 = vsel %vm923, %v2241, 0
      %2293 = vmatprep.subr.bf16.mxu0 0
      %2294 = vmatpush1.bf16.msra.mxu0 %v2291
      %2295 = vmatprep.subr.bf16.mxu0 0
      %2296 = vmatpush1.bf16.msra.mxu0 0
      %2297 = vmatprep.subr.bf16.mxu0 0
      %2298 = vmatpush1.bf16.msra.mxu0 0
      %2299 = vmatprep.subr.bf16.mxu0 0
      %2300 = vmatpush1.bf16.msra.mxu0 0
      %2301 = vmatprep.subr.bf16.mxu0 0
      %2302 = vmatpush1.bf16.msra.mxu0 0
      %2303 = vmatprep.subr.bf16.mxu0 0
      %2304 = vmatpush1.bf16.msra.mxu0 0
      %2305 = vmatprep.subr.bf16.mxu0 0
      %2306 = vmatpush1.bf16.msra.mxu0 0
      %2307 = vmatprep.subr.bf16.mxu0 0
      %2308 = vmatpush1.bf16.msra.mxu0 0
      %2309 = vmatprep.subr.bf16.mxu0 0
      %2310 = vmatpush1.bf16.msra.mxu0 0
      %2311 = vmatprep.subr.bf16.mxu0 0
      %2312 = vmatpush1.bf16.msra.mxu0 0
      %2313 = vmatprep.subr.bf16.mxu0 0
      %2314 = vmatpush1.bf16.msra.mxu0 0
      %2315 = vmatprep.subr.bf16.mxu0 0
      %2316 = vmatpush1.bf16.msra.mxu0 0
      %2317 = vmatprep.subr.bf16.mxu0 0
      %2318 = vmatpush1.bf16.msra.mxu0 0
      %2319 = vmatprep.subr.bf16.mxu0 0
      %2320 = vmatpush1.bf16.msra.mxu0 0
      %2321 = vmatprep.subr.bf16.mxu0 0
      %2322 = vmatpush1.bf16.msra.mxu0 0
      %2323 = vmatprep.subr.bf16.mxu0 0
      %2324 = vmatpush1.bf16.msra.mxu0 0
      %2325 = vmatprep.mubr.bf16.mxu0 0
      %2326 = vmatmul.mubr.bf16.gmra.mrb[0].mxu0 %v2243
      %v2327 = vpop.f32.mrb[0].mxu0
      %v2328 = vadd.f32 0.0, %v2327
      %v2329 = vpop.f32.mrb[0].mxu0
      %v2330 = vpop.f32.mrb[0].mxu0
      %v2331 = vadd.f32 0.0, %v2330
      %v2332 = vpop.f32.mrb[0].mxu0
      %2333 = vmatprep.mubr.bf16.mxu0 0
      %2334 = vmatmul.mubr.bf16.gmra.mrb[0].mxu0 %v2246
      %v2335 = vpop.f32.mrb[0].mxu0
      %v2336 = vadd.f32 0.0, %v2335
      %v2337 = vpop.f32.mrb[0].mxu0
      %v2338 = vpop.f32.mrb[0].mxu0
      %v2339 = vadd.f32 0.0, %v2338
      %v2340 = vpop.f32.mrb[0].mxu0
      %2341 = vmatprep.mubr.bf16.mxu0 0
      %2342 = vmatmul.mubr.bf16.gmra.mrb[0].mxu0 %v2249
      %v2343 = vpop.f32.mrb[0].mxu0
      %v2344 = vadd.f32 0.0, %v2343
      %v2345 = vpop.f32.mrb[0].mxu0
      %v2346 = vpop.f32.mrb[0].mxu0
      %v2347 = vadd.f32 0.0, %v2346
      %v2348 = vpop.f32.mrb[0].mxu0
      %2349 = vmatprep.mubr.bf16.mxu0 0
      %2350 = vmatmul.mubr.bf16.gmra.mrb[0].mxu0 %v2252
      %v2351 = vpop.f32.mrb[0].mxu0
      %v2352 = vadd.f32 0.0, %v2351
      %v2353 = vpop.f32.mrb[0].mxu0
      %v2354 = vpop.f32.mrb[0].mxu0
      %v2355 = vadd.f32 0.0, %v2354
      %v2356 = vpop.f32.mrb[0].mxu0
      %2357 = vmatprep.mubr.bf16.mxu0 0
      %2358 = vmatmul.mubr.bf16.gmra.mrb[0].mxu0 %v2255
      %v2359 = vpop.f32.mrb[0].mxu0
      %v2360 = vadd.f32 0.0, %v2359
      %v2361 = vpop.f32.mrb[0].mxu0
      %v2362 = vpop.f32.mrb[0].mxu0
      %v2363 = vadd.f32 0.0, %v2362
      %v2364 = vpop.f32.mrb[0].mxu0
      %2365 = vmatprep.mubr.bf16.mxu0 0
      %2366 = vmatmul.mubr.bf16.gmra.mrb[0].mxu0 %v2258
      %v2367 = vpop.f32.mrb[0].mxu0
      %v2368 = vadd.f32 0.0, %v2367
      %v2369 = vpop.f32.mrb[0].mxu0
      %v2370 = vpop.f32.mrb[0].mxu0
      %v2371 = vadd.f32 0.0, %v2370
      %v2372 = vpop.f32.mrb[0].mxu0
      %2373 = vmatprep.mubr.bf16.mxu0 0
      %2374 = vmatmul.mubr.bf16.gmra.mrb[0].mxu0 %v2261
      %v2375 = vpop.f32.mrb[0].mxu0
      %v2376 = vadd.f32 0.0, %v2375
      %v2377 = vpop.f32.mrb[0].mxu0
      %v2378 = vpop.f32.mrb[0].mxu0
      %v2379 = vadd.f32 0.0, %v2378
      %v2380 = vpop.f32.mrb[0].mxu0
      %2381 = vmatprep.mubr.bf16.mxu0 0
      %2382 = vmatmul.mubr.bf16.gmra.mrb[0].mxu0 %v2264
      %v2383 = vpop.f32.mrb[0].mxu0
      %v2384 = vadd.f32 0.0, %v2383
      %v2385 = vpop.f32.mrb[0].mxu0
      %v2386 = vpop.f32.mrb[0].mxu0
      %v2387 = vadd.f32 0.0, %v2386
      %v2388 = vpop.f32.mrb[0].mxu0
      %2389 = vmatprep.mubr.bf16.mxu0 0
      %2390 = vmatmul.mubr.bf16.gmra.mrb[0].mxu0 %v2267
      %v2391 = vpop.f32.mrb[0].mxu0
      %v2392 = vadd.f32 0.0, %v2391
      %v2393 = vpop.f32.mrb[0].mxu0
      %v2394 = vpop.f32.mrb[0].mxu0
      %v2395 = vadd.f32 0.0, %v2394
      %v2396 = vpop.f32.mrb[0].mxu0
      %2397 = vmatprep.mubr.bf16.mxu0 0
      %2398 = vmatmul.mubr.bf16.gmra.mrb[0].mxu0 %v2270
      %v2399 = vpop.f32.mrb[0].mxu0
      %v2400 = vadd.f32 0.0, %v2399
      %v2401 = vpop.f32.mrb[0].mxu0
      %v2402 = vpop.f32.mrb[0].mxu0
      %v2403 = vadd.f32 0.0, %v2402
      %v2404 = vpop.f32.mrb[0].mxu0
      %2405 = vmatprep.mubr.bf16.mxu0 0
      %2406 = vmatmul.mubr.bf16.gmra.mrb[0].mxu0 %v2273
      %v2407 = vpop.f32.mrb[0].mxu0
      %v2408 = vadd.f32 0.0, %v2407
      %v2409 = vpop.f32.mrb[0].mxu0
      %v2410 = vpop.f32.mrb[0].mxu0
      %v2411 = vadd.f32 0.0, %v2410
      %v2412 = vpop.f32.mrb[0].mxu0
      %2413 = vmatprep.mubr.bf16.mxu0 0
      %2414 = vmatmul.mubr.bf16.gmra.mrb[0].mxu0 %v2276
      %v2415 = vpop.f32.mrb[0].mxu0
      %v2416 = vadd.f32 0.0, %v2415
      %v2417 = vpop.f32.mrb[0].mxu0
      %v2418 = vpop.f32.mrb[0].mxu0
      %v2419 = vadd.f32 0.0, %v2418
      %v2420 = vpop.f32.mrb[0].mxu0
      %2421 = vmatprep.mubr.bf16.mxu0 0
      %2422 = vmatmul.mubr.bf16.gmra.mrb[0].mxu0 %v2279
      %v2423 = vpop.f32.mrb[0].mxu0
      %v2424 = vadd.f32 0.0, %v2423
      %v2425 = vpop.f32.mrb[0].mxu0
      %v2426 = vpop.f32.mrb[0].mxu0
      %v2427 = vadd.f32 0.0, %v2426
      %v2428 = vpop.f32.mrb[0].mxu0
      %2429 = vmatprep.mubr.bf16.mxu0 0
      %2430 = vmatmul.mubr.bf16.gmra.mrb[0].mxu0 %v2282
      %v2431 = vpop.f32.mrb[0].mxu0
      %v2432 = vadd.f32 0.0, %v2431
      %v2433 = vpop.f32.mrb[0].mxu0
      %v2434 = vpop.f32.mrb[0].mxu0
      %v2435 = vadd.f32 0.0, %v2434
      %v2436 = vpop.f32.mrb[0].mxu0
      %2437 = vmatprep.mubr.bf16.mxu0 0
      %2438 = vmatmul.mubr.bf16.gmra.mrb[0].mxu0 %v2285
      %v2439 = vpop.f32.mrb[0].mxu0
      %v2440 = vadd.f32 0.0, %v2439
      %v2441 = vpop.f32.mrb[0].mxu0
      %v2442 = vpop.f32.mrb[0].mxu0
      %v2443 = vadd.f32 0.0, %v2442
      %v2444 = vpop.f32.mrb[0].mxu0
      %2445 = vmatprep.mubr.bf16.mxu0 0
      %2446 = vmatmul.mubr.bf16.gmra.mrb[0].mxu0 %v2288
      %v2447 = vpop.f32.mrb[0].mxu0
      %v2448 = vadd.f32 0.0, %v2447
      %v2449 = vpop.f32.mrb[0].mxu0
      %v2450 = vpop.f32.mrb[0].mxu0
      %v2451 = vadd.f32 0.0, %v2450
      %v2452 = vpop.f32.mrb[0].mxu0
      %2453 = vdwg.mxu0
      %v2456 = vunpack.c.l.b16 %v2216
      %v2457 = vunpack.c.l.b16 %v2217
      %v2458 = vpack.c.b16 %v2457, %v2456
      %v2460 = vsel %vm796, %v2200, 0
      %v2463 = vsel %vm796, %v2201, 0
      %v2466 = vsel %vm796, %v2202, 0
      %v2469 = vsel %vm796, %v2203, 0
      %v2472 = vsel %vm796, %v2204, 0
      %v2475 = vsel %vm796, %v2205, 0
      %v2478 = vsel %vm796, %v2206, 0
      %v2481 = vsel %vm796, %v2207, 0
      %v2484 = vsel %vm796, %v2208, 0
      %v2487 = vsel %vm796, %v2209, 0
      %v2490 = vsel %vm796, %v2210, 0
      %v2493 = vsel %vm796, %v2211, 0
      %v2496 = vsel %vm796, %v2212, 0
      %v2499 = vsel %vm796, %v2213, 0
      %v2502 = vsel %vm796, %v2214, 0
      %v2505 = vsel %vm796, %v2215, 0
      %v2508 = vsel %vm923, %v2458, 0
      %2510 = vmatprep.subr.bf16.mxu0 0
      %2511 = vmatpush1.bf16.msra.mxu0 %v2508
      %2512 = vmatprep.subr.bf16.mxu0 0
      %2513 = vmatpush1.bf16.msra.mxu0 0
      %2514 = vmatprep.subr.bf16.mxu0 0
      %2515 = vmatpush1.bf16.msra.mxu0 0
      %2516 = vmatprep.subr.bf16.mxu0 0
      %2517 = vmatpush1.bf16.msra.mxu0 0
      %2518 = vmatprep.subr.bf16.mxu0 0
      %2519 = vmatpush1.bf16.msra.mxu0 0
      %2520 = vmatprep.subr.bf16.mxu0 0
      %2521 = vmatpush1.bf16.msra.mxu0 0
      %2522 = vmatprep.subr.bf16.mxu0 0
      %2523 = vmatpush1.bf16.msra.mxu0 0
      %2524 = vmatprep.subr.bf16.mxu0 0
      %2525 = vmatpush1.bf16.msra.mxu0 0
      %2526 = vmatprep.subr.bf16.mxu0 0
      %2527 = vmatpush1.bf16.msra.mxu0 0
      %2528 = vmatprep.subr.bf16.mxu0 0
      %2529 = vmatpush1.bf16.msra.mxu0 0
      %2530 = vmatprep.subr.bf16.mxu0 0
      %2531 = vmatpush1.bf16.msra.mxu0 0
      %2532 = vmatprep.subr.bf16.mxu0 0
      %2533 = vmatpush1.bf16.msra.mxu0 0
      %2534 = vmatprep.subr.bf16.mxu0 0
      %2535 = vmatpush1.bf16.msra.mxu0 0
      %2536 = vmatprep.subr.bf16.mxu0 0
      %2537 = vmatpush1.bf16.msra.mxu0 0
      %2538 = vmatprep.subr.bf16.mxu0 0
      %2539 = vmatpush1.bf16.msra.mxu0 0
      %2540 = vmatprep.subr.bf16.mxu0 0
      %2541 = vmatpush1.bf16.msra.mxu0 0
      %2542 = vmatprep.mubr.bf16.mxu0 0
      %2543 = vmatmul.mubr.bf16.gmra.mrb[0].mxu0 %v2460
      %v2544 = vpop.f32.mrb[0].mxu0
      %v2545 = vadd.f32 %v2328, %v2544
      %v2546 = vpop.f32.mrb[0].mxu0
      %v2547 = vpop.f32.mrb[0].mxu0
      %v2548 = vadd.f32 %v2331, %v2547
      %v2549 = vpop.f32.mrb[0].mxu0
      %2550 = vmatprep.mubr.bf16.mxu0 0
      %2551 = vmatmul.mubr.bf16.gmra.mrb[0].mxu0 %v2463
      %v2552 = vpop.f32.mrb[0].mxu0
      %v2553 = vadd.f32 %v2336, %v2552
      %v2554 = vpop.f32.mrb[0].mxu0
      %v2555 = vpop.f32.mrb[0].mxu0
      %v2556 = vadd.f32 %v2339, %v2555
      %v2557 = vpop.f32.mrb[0].mxu0
      %2558 = vmatprep.mubr.bf16.mxu0 0
      %2559 = vmatmul.mubr.bf16.gmra.mrb[0].mxu0 %v2466
      %v2560 = vpop.f32.mrb[0].mxu0
      %v2561 = vadd.f32 %v2344, %v2560
      %v2562 = vpop.f32.mrb[0].mxu0
      %v2563 = vpop.f32.mrb[0].mxu0
      %v2564 = vadd.f32 %v2347, %v2563
      %v2565 = vpop.f32.mrb[0].mxu0
      %2566 = vmatprep.mubr.bf16.mxu0 0
      %2567 = vmatmul.mubr.bf16.gmra.mrb[0].mxu0 %v2469
      %v2568 = vpop.f32.mrb[0].mxu0
      %v2569 = vadd.f32 %v2352, %v2568
      %v2570 = vpop.f32.mrb[0].mxu0
      %v2571 = vpop.f32.mrb[0].mxu0
      %v2572 = vadd.f32 %v2355, %v2571
      %v2573 = vpop.f32.mrb[0].mxu0
      %2574 = vmatprep.mubr.bf16.mxu0 0
      %2575 = vmatmul.mubr.bf16.gmra.mrb[0].mxu0 %v2472
      %v2576 = vpop.f32.mrb[0].mxu0
      %v2577 = vadd.f32 %v2360, %v2576
      %v2578 = vpop.f32.mrb[0].mxu0
      %v2579 = vpop.f32.mrb[0].mxu0
      %v2580 = vadd.f32 %v2363, %v2579
      %v2581 = vpop.f32.mrb[0].mxu0
      %2582 = vmatprep.mubr.bf16.mxu0 0
      %2583 = vmatmul.mubr.bf16.gmra.mrb[0].mxu0 %v2475
      %v2584 = vpop.f32.mrb[0].mxu0
      %v2585 = vadd.f32 %v2368, %v2584
      %v2586 = vpop.f32.mrb[0].mxu0
      %v2587 = vpop.f32.mrb[0].mxu0
      %v2588 = vadd.f32 %v2371, %v2587
      %v2589 = vpop.f32.mrb[0].mxu0
      %2590 = vmatprep.mubr.bf16.mxu0 0
      %2591 = vmatmul.mubr.bf16.gmra.mrb[0].mxu0 %v2478
      %v2592 = vpop.f32.mrb[0].mxu0
      %v2593 = vadd.f32 %v2376, %v2592
      %v2594 = vpop.f32.mrb[0].mxu0
      %v2595 = vpop.f32.mrb[0].mxu0
      %v2596 = vadd.f32 %v2379, %v2595
      %v2597 = vpop.f32.mrb[0].mxu0
      %2598 = vmatprep.mubr.bf16.mxu0 0
      %2599 = vmatmul.mubr.bf16.gmra.mrb[0].mxu0 %v2481
      %v2600 = vpop.f32.mrb[0].mxu0
      %v2601 = vadd.f32 %v2384, %v2600
      %v2602 = vpop.f32.mrb[0].mxu0
      %v2603 = vpop.f32.mrb[0].mxu0
      %v2604 = vadd.f32 %v2387, %v2603
      %v2605 = vpop.f32.mrb[0].mxu0
      %2606 = vmatprep.mubr.bf16.mxu0 0
      %2607 = vmatmul.mubr.bf16.gmra.mrb[0].mxu0 %v2484
      %v2608 = vpop.f32.mrb[0].mxu0
      %v2609 = vadd.f32 %v2392, %v2608
      %v2610 = vpop.f32.mrb[0].mxu0
      %v2611 = vpop.f32.mrb[0].mxu0
      %v2612 = vadd.f32 %v2395, %v2611
      %v2613 = vpop.f32.mrb[0].mxu0
      %2614 = vmatprep.mubr.bf16.mxu0 0
      %2615 = vmatmul.mubr.bf16.gmra.mrb[0].mxu0 %v2487
      %v2616 = vpop.f32.mrb[0].mxu0
      %v2617 = vadd.f32 %v2400, %v2616
      %v2618 = vpop.f32.mrb[0].mxu0
      %v2619 = vpop.f32.mrb[0].mxu0
      %v2620 = vadd.f32 %v2403, %v2619
      %v2621 = vpop.f32.mrb[0].mxu0
      %2622 = vmatprep.mubr.bf16.mxu0 0
      %2623 = vmatmul.mubr.bf16.gmra.mrb[0].mxu0 %v2490
      %v2624 = vpop.f32.mrb[0].mxu0
      %v2625 = vadd.f32 %v2408, %v2624
      %v2626 = vpop.f32.mrb[0].mxu0
      %v2627 = vpop.f32.mrb[0].mxu0
      %v2628 = vadd.f32 %v2411, %v2627
      %v2629 = vpop.f32.mrb[0].mxu0
      %2630 = vmatprep.mubr.bf16.mxu0 0
      %2631 = vmatmul.mubr.bf16.gmra.mrb[0].mxu0 %v2493
      %v2632 = vpop.f32.mrb[0].mxu0
      %v2633 = vadd.f32 %v2416, %v2632
      %v2634 = vpop.f32.mrb[0].mxu0
      %v2635 = vpop.f32.mrb[0].mxu0
      %v2636 = vadd.f32 %v2419, %v2635
      %v2637 = vpop.f32.mrb[0].mxu0
      %2638 = vmatprep.mubr.bf16.mxu0 0
      %2639 = vmatmul.mubr.bf16.gmra.mrb[0].mxu0 %v2496
      %v2640 = vpop.f32.mrb[0].mxu0
      %v2641 = vadd.f32 %v2424, %v2640
      %v2642 = vpop.f32.mrb[0].mxu0
      %v2643 = vpop.f32.mrb[0].mxu0
      %v2644 = vadd.f32 %v2427, %v2643
      %v2645 = vpop.f32.mrb[0].mxu0
      %2646 = vmatprep.mubr.bf16.mxu0 0
      %2647 = vmatmul.mubr.bf16.gmra.mrb[0].mxu0 %v2499
      %v2648 = vpop.f32.mrb[0].mxu0
      %v2649 = vadd.f32 %v2432, %v2648
      %v2650 = vpop.f32.mrb[0].mxu0
      %v2651 = vpop.f32.mrb[0].mxu0
      %v2652 = vadd.f32 %v2435, %v2651
      %v2653 = vpop.f32.mrb[0].mxu0
      %2654 = vmatprep.mubr.bf16.mxu0 0
      %2655 = vmatmul.mubr.bf16.gmra.mrb[0].mxu0 %v2502
      %v2656 = vpop.f32.mrb[0].mxu0
      %v2657 = vadd.f32 %v2440, %v2656
      %v2658 = vpop.f32.mrb[0].mxu0
      %v2659 = vpop.f32.mrb[0].mxu0
      %v2660 = vadd.f32 %v2443, %v2659
      %v2661 = vpop.f32.mrb[0].mxu0
      %2662 = vmatprep.mubr.bf16.mxu0 0
      %2663 = vmatmul.mubr.bf16.gmra.mrb[0].mxu0 %v2505
      %v2664 = vpop.f32.mrb[0].mxu0
      %v2665 = vadd.f32 %v2448, %v2664
      %v2666 = vpop.f32.mrb[0].mxu0
      %v2667 = vpop.f32.mrb[0].mxu0
      %v2668 = vadd.f32 %v2451, %v2667
      %v2669 = vpop.f32.mrb[0].mxu0
      %2670 = vdwg.mxu0
      %s2671 = scalar_lea.vmem [#allocation3], 16
      %v2672 = vld [vmem:[%s2671] sm:$0xff]
      %v2673 = vld [vmem:[%s2671 + $0x8] sm:$0xff]
      %v2674 = vld [vmem:[%s2671 + $0x10] sm:$0xff]
      %v2675 = vld [vmem:[%s2671 + $0x18] sm:$0xff]
      %v2676 = vld [vmem:[%s2671 + $0x20] sm:$0xff]
      %v2677 = vld [vmem:[%s2671 + $0x28] sm:$0xff]
      %v2678 = vld [vmem:[%s2671 + $0x30] sm:$0xff]
      %v2679 = vld [vmem:[%s2671 + $0x38] sm:$0xff]
      %v2680 = vld [vmem:[%s2671 + $0x40] sm:$0xff]
      %v2681 = vld [vmem:[%s2671 + $0x48] sm:$0xff]
      %v2682 = vld [vmem:[%s2671 + $0x50] sm:$0xff]
      %v2683 = vld [vmem:[%s2671 + $0x58] sm:$0xff]
      %v2684 = vld [vmem:[%s2671 + $0x60] sm:$0xff]
      %v2685 = vld [vmem:[%s2671 + $0x68] sm:$0xff]
      %v2686 = vld [vmem:[%s2671 + $0x70] sm:$0xff]
      %v2687 = vld [vmem:[%s2671 + $0x78] sm:$0xff]
      %s2688 = scalar_lea.vmem %s4, 16
      %v2689 = vld [vmem:[%s2688] sm:$0xf]
      %v2690 = vld [vmem:[%s2688 + $0x4] sm:$0x3]
      %v2693 = vunpack.c.l.b16 %v2689
      %v2694 = vunpack.c.l.b16 %v2690
      %v2695 = vpack.c.b16 %v2694, %v2693
      %v2697 = vsel %vm796, %v2672, 0
      %v2700 = vsel %vm796, %v2673, 0
      %v2703 = vsel %vm796, %v2674, 0
      %v2706 = vsel %vm796, %v2675, 0
      %v2709 = vsel %vm796, %v2676, 0
      %v2712 = vsel %vm796, %v2677, 0
      %v2715 = vsel %vm796, %v2678, 0
      %v2718 = vsel %vm796, %v2679, 0
      %v2721 = vsel %vm796, %v2680, 0
      %v2724 = vsel %vm796, %v2681, 0
      %v2727 = vsel %vm796, %v2682, 0
      %v2730 = vsel %vm796, %v2683, 0
      %v2733 = vsel %vm796, %v2684, 0
      %v2736 = vsel %vm796, %v2685, 0
      %v2739 = vsel %vm796, %v2686, 0
      %v2742 = vsel %vm796, %v2687, 0
      %v2745 = vsel %vm923, %v2695, 0
      %2747 = vmatprep.subr.bf16.mxu0 0
      %2748 = vmatpush1.bf16.msra.mxu0 %v2745
      %2749 = vmatprep.subr.bf16.mxu0 0
      %2750 = vmatpush1.bf16.msra.mxu0 0
      %2751 = vmatprep.subr.bf16.mxu0 0
      %2752 = vmatpush1.bf16.msra.mxu0 0
      %2753 = vmatprep.subr.bf16.mxu0 0
      %2754 = vmatpush1.bf16.msra.mxu0 0
      %2755 = vmatprep.subr.bf16.mxu0 0
      %2756 = vmatpush1.bf16.msra.mxu0 0
      %2757 = vmatprep.subr.bf16.mxu0 0
      %2758 = vmatpush1.bf16.msra.mxu0 0
      %2759 = vmatprep.subr.bf16.mxu0 0
      %2760 = vmatpush1.bf16.msra.mxu0 0
      %2761 = vmatprep.subr.bf16.mxu0 0
      %2762 = vmatpush1.bf16.msra.mxu0 0
      %2763 = vmatprep.subr.bf16.mxu0 0
      %2764 = vmatpush1.bf16.msra.mxu0 0
      %2765 = vmatprep.subr.bf16.mxu0 0
      %2766 = vmatpush1.bf16.msra.mxu0 0
      %2767 = vmatprep.subr.bf16.mxu0 0
      %2768 = vmatpush1.bf16.msra.mxu0 0
      %2769 = vmatprep.subr.bf16.mxu0 0
      %2770 = vmatpush1.bf16.msra.mxu0 0
      %2771 = vmatprep.subr.bf16.mxu0 0
      %2772 = vmatpush1.bf16.msra.mxu0 0
      %2773 = vmatprep.subr.bf16.mxu0 0
      %2774 = vmatpush1.bf16.msra.mxu0 0
      %2775 = vmatprep.subr.bf16.mxu0 0
      %2776 = vmatpush1.bf16.msra.mxu0 0
      %2777 = vmatprep.subr.bf16.mxu0 0
      %2778 = vmatpush1.bf16.msra.mxu0 0
      %2779 = vmatprep.mubr.bf16.mxu0 0
      %2780 = vmatmul.mubr.bf16.gmra.mrb[0].mxu0 %v2697
      %v2781 = vpop.f32.mrb[0].mxu0
      %v2782 = vadd.f32 0.0, %v2781
      %v2783 = vpop.f32.mrb[0].mxu0
      %v2784 = vpop.f32.mrb[0].mxu0
      %v2785 = vadd.f32 0.0, %v2784
      %v2786 = vpop.f32.mrb[0].mxu0
      %2787 = vmatprep.mubr.bf16.mxu0 0
      %2788 = vmatmul.mubr.bf16.gmra.mrb[0].mxu0 %v2700
      %v2789 = vpop.f32.mrb[0].mxu0
      %v2790 = vadd.f32 0.0, %v2789
      %v2791 = vpop.f32.mrb[0].mxu0
      %v2792 = vpop.f32.mrb[0].mxu0
      %v2793 = vadd.f32 0.0, %v2792
      %v2794 = vpop.f32.mrb[0].mxu0
      %2795 = vmatprep.mubr.bf16.mxu0 0
      %2796 = vmatmul.mubr.bf16.gmra.mrb[0].mxu0 %v2703
      %v2797 = vpop.f32.mrb[0].mxu0
      %v2798 = vadd.f32 0.0, %v2797
      %v2799 = vpop.f32.mrb[0].mxu0
      %v2800 = vpop.f32.mrb[0].mxu0
      %v2801 = vadd.f32 0.0, %v2800
      %v2802 = vpop.f32.mrb[0].mxu0
      %2803 = vmatprep.mubr.bf16.mxu0 0
      %2804 = vmatmul.mubr.bf16.gmra.mrb[0].mxu0 %v2706
      %v2805 = vpop.f32.mrb[0].mxu0
      %v2806 = vadd.f32 0.0, %v2805
      %v2807 = vpop.f32.mrb[0].mxu0
      %v2808 = vpop.f32.mrb[0].mxu0
      %v2809 = vadd.f32 0.0, %v2808
      %v2810 = vpop.f32.mrb[0].mxu0
      %2811 = vmatprep.mubr.bf16.mxu0 0
      %2812 = vmatmul.mubr.bf16.gmra.mrb[0].mxu0 %v2709
      %v2813 = vpop.f32.mrb[0].mxu0
      %v2814 = vadd.f32 0.0, %v2813
      %v2815 = vpop.f32.mrb[0].mxu0
      %v2816 = vpop.f32.mrb[0].mxu0
      %v2817 = vadd.f32 0.0, %v2816
      %v2818 = vpop.f32.mrb[0].mxu0
      %2819 = vmatprep.mubr.bf16.mxu0 0
      %2820 = vmatmul.mubr.bf16.gmra.mrb[0].mxu0 %v2712
      %v2821 = vpop.f32.mrb[0].mxu0
      %v2822 = vadd.f32 0.0, %v2821
      %v2823 = vpop.f32.mrb[0].mxu0
      %v2824 = vpop.f32.mrb[0].mxu0
      %v2825 = vadd.f32 0.0, %v2824
      %v2826 = vpop.f32.mrb[0].mxu0
      %2827 = vmatprep.mubr.bf16.mxu0 0
      %2828 = vmatmul.mubr.bf16.gmra.mrb[0].mxu0 %v2715
      %v2829 = vpop.f32.mrb[0].mxu0
      %v2830 = vadd.f32 0.0, %v2829
      %v2831 = vpop.f32.mrb[0].mxu0
      %v2832 = vpop.f32.mrb[0].mxu0
      %v2833 = vadd.f32 0.0, %v2832
      %v2834 = vpop.f32.mrb[0].mxu0
      %2835 = vmatprep.mubr.bf16.mxu0 0
      %2836 = vmatmul.mubr.bf16.gmra.mrb[0].mxu0 %v2718
      %v2837 = vpop.f32.mrb[0].mxu0
      %v2838 = vadd.f32 0.0, %v2837
      %v2839 = vpop.f32.mrb[0].mxu0
      %v2840 = vpop.f32.mrb[0].mxu0
      %v2841 = vadd.f32 0.0, %v2840
      %v2842 = vpop.f32.mrb[0].mxu0
      %2843 = vmatprep.mubr.bf16.mxu0 0
      %2844 = vmatmul.mubr.bf16.gmra.mrb[0].mxu0 %v2721
      %v2845 = vpop.f32.mrb[0].mxu0
      %v2846 = vadd.f32 0.0, %v2845
      %v2847 = vpop.f32.mrb[0].mxu0
      %v2848 = vpop.f32.mrb[0].mxu0
      %v2849 = vadd.f32 0.0, %v2848
      %v2850 = vpop.f32.mrb[0].mxu0
      %2851 = vmatprep.mubr.bf16.mxu0 0
      %2852 = vmatmul.mubr.bf16.gmra.mrb[0].mxu0 %v2724
      %v2853 = vpop.f32.mrb[0].mxu0
      %v2854 = vadd.f32 0.0, %v2853
      %v2855 = vpop.f32.mrb[0].mxu0
      %v2856 = vpop.f32.mrb[0].mxu0
      %v2857 = vadd.f32 0.0, %v2856
      %v2858 = vpop.f32.mrb[0].mxu0
      %2859 = vmatprep.mubr.bf16.mxu0 0
      %2860 = vmatmul.mubr.bf16.gmra.mrb[0].mxu0 %v2727
      %v2861 = vpop.f32.mrb[0].mxu0
      %v2862 = vadd.f32 0.0, %v2861
      %v2863 = vpop.f32.mrb[0].mxu0
      %v2864 = vpop.f32.mrb[0].mxu0
      %v2865 = vadd.f32 0.0, %v2864
      %v2866 = vpop.f32.mrb[0].mxu0
      %2867 = vmatprep.mubr.bf16.mxu0 0
      %2868 = vmatmul.mubr.bf16.gmra.mrb[0].mxu0 %v2730
      %v2869 = vpop.f32.mrb[0].mxu0
      %v2870 = vadd.f32 0.0, %v2869
      %v2871 = vpop.f32.mrb[0].mxu0
      %v2872 = vpop.f32.mrb[0].mxu0
      %v2873 = vadd.f32 0.0, %v2872
      %v2874 = vpop.f32.mrb[0].mxu0
      %2875 = vmatprep.mubr.bf16.mxu0 0
      %2876 = vmatmul.mubr.bf16.gmra.mrb[0].mxu0 %v2733
      %v2877 = vpop.f32.mrb[0].mxu0
      %v2878 = vadd.f32 0.0, %v2877
      %v2879 = vpop.f32.mrb[0].mxu0
      %v2880 = vpop.f32.mrb[0].mxu0
      %v2881 = vadd.f32 0.0, %v2880
      %v2882 = vpop.f32.mrb[0].mxu0
      %2883 = vmatprep.mubr.bf16.mxu0 0
      %2884 = vmatmul.mubr.bf16.gmra.mrb[0].mxu0 %v2736
      %v2885 = vpop.f32.mrb[0].mxu0
      %v2886 = vadd.f32 0.0, %v2885
      %v2887 = vpop.f32.mrb[0].mxu0
      %v2888 = vpop.f32.mrb[0].mxu0
      %v2889 = vadd.f32 0.0, %v2888
      %v2890 = vpop.f32.mrb[0].mxu0
      %2891 = vmatprep.mubr.bf16.mxu0 0
      %2892 = vmatmul.mubr.bf16.gmra.mrb[0].mxu0 %v2739
      %v2893 = vpop.f32.mrb[0].mxu0
      %v2894 = vadd.f32 0.0, %v2893
      %v2895 = vpop.f32.mrb[0].mxu0
      %v2896 = vpop.f32.mrb[0].mxu0
      %v2897 = vadd.f32 0.0, %v2896
      %v2898 = vpop.f32.mrb[0].mxu0
      %2899 = vmatprep.mubr.bf16.mxu0 0
      %2900 = vmatmul.mubr.bf16.gmra.mrb[0].mxu0 %v2742
      %v2901 = vpop.f32.mrb[0].mxu0
      %v2902 = vadd.f32 0.0, %v2901
      %v2903 = vpop.f32.mrb[0].mxu0
      %v2904 = vpop.f32.mrb[0].mxu0
      %v2905 = vadd.f32 0.0, %v2904
      %v2906 = vpop.f32.mrb[0].mxu0
      %2907 = vdwg.mxu0
      %v2908 = vadd.f32 %v2545, %v2782
      %v2909 = vadd.f32 %v2548, %v2785
      %v2910 = vadd.f32 %v2553, %v2790
      %v2911 = vadd.f32 %v2556, %v2793
      %v2912 = vadd.f32 %v2561, %v2798
      %v2913 = vadd.f32 %v2564, %v2801
      %v2914 = vadd.f32 %v2569, %v2806
      %v2915 = vadd.f32 %v2572, %v2809
      %v2916 = vadd.f32 %v2577, %v2814
      %v2917 = vadd.f32 %v2580, %v2817
      %v2918 = vadd.f32 %v2585, %v2822
      %v2919 = vadd.f32 %v2588, %v2825
      %v2920 = vadd.f32 %v2593, %v2830
      %v2921 = vadd.f32 %v2596, %v2833
      %v2922 = vadd.f32 %v2601, %v2838
      %v2923 = vadd.f32 %v2604, %v2841
      %v2924 = vadd.f32 %v2609, %v2846
      %v2925 = vadd.f32 %v2612, %v2849
      %v2926 = vadd.f32 %v2617, %v2854
      %v2927 = vadd.f32 %v2620, %v2857
      %v2928 = vadd.f32 %v2625, %v2862
      %v2929 = vadd.f32 %v2628, %v2865
      %v2930 = vadd.f32 %v2633, %v2870
      %v2931 = vadd.f32 %v2636, %v2873
      %v2932 = vadd.f32 %v2641, %v2878
      %v2933 = vadd.f32 %v2644, %v2881
      %v2934 = vadd.f32 %v2649, %v2886
      %v2935 = vadd.f32 %v2652, %v2889
      %v2936 = vadd.f32 %v2657, %v2894
      %v2937 = vadd.f32 %v2660, %v2897
      %v2938 = vadd.f32 %v2665, %v2902
      %v2939 = vadd.f32 %v2668, %v2905
      %v2940 = vld [vmem:[%s5] sm:$0x1]
      %v2942 = vlaneseq
      %v2943 = vshrl.u32 %v2942, 7
      %v2944 = vsub.s32 0, %v2943
      %v2945 = vrot.slane %v2940, %v2944
      %v2947 = vmul.f32 %v2908, %v2945
      %v2948 = vmul.f32 %v2909, %v2945
      %v2949 = vmul.f32 %v2910, %v2945
      %v2950 = vmul.f32 %v2911, %v2945
      %v2951 = vmul.f32 %v2912, %v2945
      %v2952 = vmul.f32 %v2913, %v2945
      %v2953 = vmul.f32 %v2914, %v2945
      %v2954 = vmul.f32 %v2915, %v2945
      %v2955 = vmul.f32 %v2916, %v2945
      %v2956 = vmul.f32 %v2917, %v2945
      %v2957 = vmul.f32 %v2918, %v2945
      %v2958 = vmul.f32 %v2919, %v2945
      %v2959 = vmul.f32 %v2920, %v2945
      %v2960 = vmul.f32 %v2921, %v2945
      %v2961 = vmul.f32 %v2922, %v2945
      %v2962 = vmul.f32 %v2923, %v2945
      %v2963 = vmul.f32 %v2924, %v2945
      %v2964 = vmul.f32 %v2925, %v2945
      %v2965 = vmul.f32 %v2926, %v2945
      %v2966 = vmul.f32 %v2927, %v2945
      %v2967 = vmul.f32 %v2928, %v2945
      %v2968 = vmul.f32 %v2929, %v2945
      %v2969 = vmul.f32 %v2930, %v2945
      %v2970 = vmul.f32 %v2931, %v2945
      %v2971 = vmul.f32 %v2932, %v2945
      %v2972 = vmul.f32 %v2933, %v2945
      %v2973 = vmul.f32 %v2934, %v2945
      %v2974 = vmul.f32 %v2935, %v2945
      %v2975 = vmul.f32 %v2936, %v2945
      %v2976 = vmul.f32 %v2937, %v2945
      %v2977 = vmul.f32 %v2938, %v2945
      %v2978 = vmul.f32 %v2939, %v2945
      %v2979 = vld [vmem:[%s6] sm:$0x1]
      %v2981 = vlaneseq
      %v2982 = vshrl.u32 %v2981, 7
      %v2983 = vsub.s32 0, %v2982
      %v2984 = vrot.slane %v2979, %v2983
      %v2986 = vadd.f32 %v2947, %v2984
      %v2987 = vadd.f32 %v2948, %v2984
      %v2988 = vadd.f32 %v2949, %v2984
      %v2989 = vadd.f32 %v2950, %v2984
      %v2990 = vadd.f32 %v2951, %v2984
      %v2991 = vadd.f32 %v2952, %v2984
      %v2992 = vadd.f32 %v2953, %v2984
      %v2993 = vadd.f32 %v2954, %v2984
      %v2994 = vadd.f32 %v2955, %v2984
      %v2995 = vadd.f32 %v2956, %v2984
      %v2996 = vadd.f32 %v2957, %v2984
      %v2997 = vadd.f32 %v2958, %v2984
      %v2998 = vadd.f32 %v2959, %v2984
      %v2999 = vadd.f32 %v2960, %v2984
      %v3000 = vadd.f32 %v2961, %v2984
      %v3001 = vadd.f32 %v2962, %v2984
      %v3002 = vadd.f32 %v2963, %v2984
      %v3003 = vadd.f32 %v2964, %v2984
      %v3004 = vadd.f32 %v2965, %v2984
      %v3005 = vadd.f32 %v2966, %v2984
      %v3006 = vadd.f32 %v2967, %v2984
      %v3007 = vadd.f32 %v2968, %v2984
      %v3008 = vadd.f32 %v2969, %v2984
      %v3009 = vadd.f32 %v2970, %v2984
      %v3010 = vadd.f32 %v2971, %v2984
      %v3011 = vadd.f32 %v2972, %v2984
      %v3012 = vadd.f32 %v2973, %v2984
      %v3013 = vadd.f32 %v2974, %v2984
      %v3014 = vadd.f32 %v2975, %v2984
      %v3015 = vadd.f32 %v2976, %v2984
      %v3016 = vadd.f32 %v2977, %v2984
      %v3017 = vadd.f32 %v2978, %v2984
      %v3018 = vadd.f32 %v2986, %v280
      %v3019 = vadd.f32 %v2987, %v281
      %v3020 = vadd.f32 %v2988, %v282
      %v3021 = vadd.f32 %v2989, %v283
      %v3022 = vadd.f32 %v2990, %v284
      %v3023 = vadd.f32 %v2991, %v285
      %v3024 = vadd.f32 %v2992, %v286
      %v3025 = vadd.f32 %v2993, %v287
      %v3026 = vadd.f32 %v2994, %v288
      %v3027 = vadd.f32 %v2995, %v289
      %v3028 = vadd.f32 %v2996, %v290
      %v3029 = vadd.f32 %v2997, %v291
      %v3030 = vadd.f32 %v2998, %v292
      %v3031 = vadd.f32 %v2999, %v293
      %v3032 = vadd.f32 %v3000, %v294
      %v3033 = vadd.f32 %v3001, %v295
      %v3034 = vadd.f32 %v3002, %v296
      %v3035 = vadd.f32 %v3003, %v297
      %v3036 = vadd.f32 %v3004, %v298
      %v3037 = vadd.f32 %v3005, %v299
      %v3038 = vadd.f32 %v3006, %v300
      %v3039 = vadd.f32 %v3007, %v301
      %v3040 = vadd.f32 %v3008, %v302
      %v3041 = vadd.f32 %v3009, %v303
      %v3042 = vadd.f32 %v3010, %v304
      %v3043 = vadd.f32 %v3011, %v305
      %v3044 = vadd.f32 %v3012, %v306
      %v3045 = vadd.f32 %v3013, %v307
      %v3046 = vadd.f32 %v3014, %v308
      %v3047 = vadd.f32 %v3015, %v309
      %v3048 = vadd.f32 %v3016, %v310
      %v3049 = vadd.f32 %v3017, %v311
      %v3050 = vmax.f32 %v3018, 0.0
      %v3051 = vmax.f32 %v3019, 0.0
      %v3052 = vmax.f32 %v3020, 0.0
      %v3053 = vmax.f32 %v3021, 0.0
      %v3054 = vmax.f32 %v3022, 0.0
      %v3055 = vmax.f32 %v3023, 0.0
      %v3056 = vmax.f32 %v3024, 0.0
      %v3057 = vmax.f32 %v3025, 0.0
      %v3058 = vmax.f32 %v3026, 0.0
      %v3059 = vmax.f32 %v3027, 0.0
      %v3060 = vmax.f32 %v3028, 0.0
      %v3061 = vmax.f32 %v3029, 0.0
      %v3062 = vmax.f32 %v3030, 0.0
      %v3063 = vmax.f32 %v3031, 0.0
      %v3064 = vmax.f32 %v3032, 0.0
      %v3065 = vmax.f32 %v3033, 0.0
      %v3066 = vmax.f32 %v3034, 0.0
      %v3067 = vmax.f32 %v3035, 0.0
      %v3068 = vmax.f32 %v3036, 0.0
      %v3069 = vmax.f32 %v3037, 0.0
      %v3070 = vmax.f32 %v3038, 0.0
      %v3071 = vmax.f32 %v3039, 0.0
      %v3072 = vmax.f32 %v3040, 0.0
      %v3073 = vmax.f32 %v3041, 0.0
      %v3074 = vmax.f32 %v3042, 0.0
      %v3075 = vmax.f32 %v3043, 0.0
      %v3076 = vmax.f32 %v3044, 0.0
      %v3077 = vmax.f32 %v3045, 0.0
      %v3078 = vmax.f32 %v3046, 0.0
      %v3079 = vmax.f32 %v3047, 0.0
      %v3080 = vmax.f32 %v3048, 0.0
      %v3081 = vmax.f32 %v3049, 0.0
      %3082 = vst.msk [vmem:[%s278] sm:$0xff] %vm730, %v3050
      %3083 = vst.msk [vmem:[%s278 + $0x8] sm:$0xff] %vm730, %v3051
      %3084 = vst.msk [vmem:[%s278 + $0x10] sm:$0xff] %vm730, %v3052
      %3085 = vst.msk [vmem:[%s278 + $0x18] sm:$0xff] %vm730, %v3053
      %3086 = vst.msk [vmem:[%s278 + $0x20] sm:$0xff] %vm730, %v3054
      %3087 = vst.msk [vmem:[%s278 + $0x28] sm:$0xff] %vm730, %v3055
      %3088 = vst.msk [vmem:[%s278 + $0x30] sm:$0xff] %vm730, %v3056
      %3089 = vst.msk [vmem:[%s278 + $0x38] sm:$0xff] %vm730, %v3057
      %3090 = vst.msk [vmem:[%s278 + $0x40] sm:$0xff] %vm730, %v3058
      %3091 = vst.msk [vmem:[%s278 + $0x48] sm:$0xff] %vm730, %v3059
      %3092 = vst.msk [vmem:[%s278 + $0x50] sm:$0xff] %vm730, %v3060
      %3093 = vst.msk [vmem:[%s278 + $0x58] sm:$0xff] %vm730, %v3061
      %3094 = vst.msk [vmem:[%s278 + $0x60] sm:$0xff] %vm730, %v3062
      %3095 = vst.msk [vmem:[%s278 + $0x68] sm:$0xff] %vm730, %v3063
      %3096 = vst.msk [vmem:[%s278 + $0x70] sm:$0xff] %vm730, %v3064
      %3097 = vst.msk [vmem:[%s278 + $0x78] sm:$0xff] %vm730, %v3065
      %3098 = vst.msk [vmem:[%s278 + $0x80] sm:$0xff] %vm730, %v3066
      %3099 = vst.msk [vmem:[%s278 + $0x88] sm:$0xff] %vm730, %v3067
      %3100 = vst.msk [vmem:[%s278 + $0x90] sm:$0xff] %vm730, %v3068
      %3101 = vst.msk [vmem:[%s278 + $0x98] sm:$0xff] %vm730, %v3069
      %3102 = vst.msk [vmem:[%s278 + $0xa0] sm:$0xff] %vm730, %v3070
      %3103 = vst.msk [vmem:[%s278 + $0xa8] sm:$0xff] %vm730, %v3071
      %3104 = vst.msk [vmem:[%s278 + $0xb0] sm:$0xff] %vm730, %v3072
      %3105 = vst.msk [vmem:[%s278 + $0xb8] sm:$0xff] %vm730, %v3073
      %3106 = vst.msk [vmem:[%s278 + $0xc0] sm:$0xff] %vm730, %v3074
      %3107 = vst.msk [vmem:[%s278 + $0xc8] sm:$0xff] %vm730, %v3075
      %3108 = vst.msk [vmem:[%s278 + $0xd0] sm:$0xff] %vm730, %v3076
      %3109 = vst.msk [vmem:[%s278 + $0xd8] sm:$0xff] %vm730, %v3077
      %3110 = vst.msk [vmem:[%s278 + $0xe0] sm:$0xff] %vm730, %v3078
      %3111 = vst.msk [vmem:[%s278 + $0xe8] sm:$0xff] %vm730, %v3079
      %3112 = vst.msk [vmem:[%s278 + $0xf0] sm:$0xff] %vm730, %v3080
      %3113 = vst.msk [vmem:[%s278 + $0xf8] sm:$0xff] %vm730, %v3081
      %p3114 = scmp.lt.s32.totalorder %s18, 1
      %s3115 = scalar_select %p3114, %s18, 1
      %s3116 = smul.addr %s3115, 32
      %s3117 = smul.addr %s3116, 8
      %s3118 = scalar_lea.vmem %s7, %s3117
      // Predicated region
      $region49: #{tpu_custom_call.1} parent=47 // pred_check
        %p3119 = pneg %p188
      $region50: #{tpu_custom_call.1} parent=47 // pred_check_branch
        %3121 = sbr.rel (%p3119) target = $region52
      $region51: #{tpu_custom_call.1} parent=47 // pred_region
        _
      $region52: #{tpu_custom_call.1} parent=47 // pred_fallthru
        _
    $region48: #{tpu_custom_call.1} parent=5 // pred_fallthru
      _
    %p3122 = scmp.le.s32.totalorder 2, %s13
    // Predicated region
    $region53: #{tpu_custom_call.1} parent=5 // pred_check
      %p3123 = pneg %p3122
    $region54: #{tpu_custom_call.1} parent=5 // pred_check_branch
      %3125 = sbr.rel (%p3123) target = $region56
    $region55: #{tpu_custom_call.1} parent=5 // pred_region
      %s3126 = ssub.s32 %s13, 2
      // Predicated region
      $region57: #{tpu_custom_call.1} parent=55 // pred_check
        %p3127 = pneg %p194
      $region58: #{tpu_custom_call.1} parent=55 // pred_check_branch
        %3129 = sbr.rel (%p3127) target = $region60
      $region59: #{tpu_custom_call.1} parent=55 // pred_region
        %p3130 = scmp.lt.s32.totalorder %s19, 1
        %s3131 = scalar_select %p3130, %s19, 1
        %s3132 = smul.addr %s3131, 32
        %s3133 = smul.addr %s3132, 8
        %s3134 = scalar_lea.vmem %s7, %s3133
      $region60: #{tpu_custom_call.1} parent=55 // pred_fallthru
        _
    $region56: #{tpu_custom_call.1} parent=5 // pred_fallthru
      _
  $region6: #{tpu_custom_call.1} parent=0 // loop_footer
    %s17 = sadd.s32 1, %s13
  $region7: #{tpu_custom_call.1} parent=0 // loop_footer_branch
    %12 = sbr.rel target = $region3
  $region8: #{tpu_custom_call.1} parent=0 // loop_exit
    _

</llo_original>
